<compile_context>
chip_gen: v6e
topology: v6e:2x2x1
jax: 0.10.0
libtpu: 0.0.40
codegen_flags: <defaults>
</compile_context>

<pallas_src>
import functools

import jax
import jax.numpy as jnp
from jax import lax
from jax.experimental import pallas as pl
from jax.experimental.pallas import tpu as pltpu


# --------------------------------------------------------------------------- #
# Kernel: one image per grid step.
#   xs_ref : (1, 2, (H+1)*W, C_in)  bf16   -- dj-shifted, row-flattened views
#   w_ref  : (4, C_in, N_pad)       bf16   -- BN-folded per-slab phase weights
#   b_ref  : (1, N_pad)             f32    -- BN-folded bias (tiled over phases)
#   o_ref  : (1, H*W, N_pad)        f32
# --------------------------------------------------------------------------- #
def _deconv_bn_relu_kernel(xs_ref, w_ref, b_ref, o_ref, *, H, W):
    HW = H * W
    acc = None
    s = 0
    for di in (0, 1):            # row (H) shift: static, sublane-aligned slice
        for dj in (0, 1):        # col (W) shift: pre-baked into the dj view
            slab = xs_ref[0, dj, di * W:di * W + HW, :]          # (HW, C_in) bf16
            part = jnp.dot(slab, w_ref[s],
                           preferred_element_type=jnp.float32)   # f32 accumulate
            acc = part if acc is None else acc + part
            s += 1
    # Epilogue (BN already folded): bias + ReLU, f32.
    o_ref[0] = jnp.maximum(acc + b_ref[...], 0.0)


# --------------------------------------------------------------------------- #
# One-time weight preparation (hoisted out of the per-call hot path).
# --------------------------------------------------------------------------- #
def prepare_params(p):
    w = p["w"]                                   # (C_in, C_out, 3, 3) ConvT layout
    C_in, C_out = int(w.shape[0]), int(w.shape[1])

    # Fold eval-mode BatchNorm into weight / bias.
    scale = p["gamma"] / jnp.sqrt(p["var"] + p["eps"])            # (C_out,)
    w_f = w * scale[None, :, None, None]
    b_f = (p["b"] - p["mean"]) * scale + p["beta"]                # (C_out,)

    n = 4 * C_out
    n_pad = max(128, ((n + 127) // 128) * 128)   # lane-dense output stores

    # Per-slab (di,dj) weight blocks; phase (rh,rw) column order is rh-major.
    # Valid tap: kh = rh + 1 - 2*di, kw = rw + 1 - 2*dj (zero block otherwise).
    blocks = []
    for di in (0, 1):
        for dj in (0, 1):
            cols = []
            for rh in (0, 1):
                for rw in (0, 1):
                    if (di == 0 or rh == 1) and (dj == 0 or rw == 1):
                        cols.append(w_f[:, :, rh + 1 - 2 * di, rw + 1 - 2 * dj])
                    else:
                        cols.append(jnp.zeros((C_in, C_out), w_f.dtype))
            blk = jnp.concatenate(cols, axis=1)                   # (C_in, 4*C_out)
            blk = jnp.pad(blk, ((0, 0), (0, n_pad - n)))
            blocks.append(blk)
    w_big = jnp.stack(blocks, axis=0).astype(jnp.bfloat16)        # (4, C_in, N_pad)
    bias_big = jnp.pad(jnp.tile(b_f, 4), (0, n_pad - n))[None, :].astype(jnp.float32)
    # TODO(synk): for very large C_in*C_out (bf16 weight >~16 MiB) add a K grid
    # axis ("arbitrary") with a VMEM f32 accumulator instead of keeping the
    # whole weight VMEM-resident (matters on v7x's 64 MiB VMEM).
    return {"w": w_big, "b": bias_big}, C_out


# --------------------------------------------------------------------------- #
# Forward: x (B, C_in, H, W) f32 NCHW  ->  (B, C_out, 2H, 2W) f32 NCHW.
# --------------------------------------------------------------------------- #
@functools.partial(jax.jit, static_argnames=("c_out",))
def deconv2d_block_forward(x, prep, *, c_out):
    w_big, bias_big = prep["w"], prep["b"]
    B, C_in, H, W = x.shape
    n_pad = w_big.shape[-1]
    HW = H * W

    # Compact im2col: single zero-padded NHWC image, two W-shifted bf16 views,
    # flattened over (H+1, W) so the kernel's di-shift is an aligned row slice.
    x_nhwc = jnp.transpose(x, (0, 2, 3, 1))
    xp = jnp.pad(x_nhwc, ((0, 0), (0, 1), (0, 1), (0, 0)))        # bottom row / right col
    xs = jnp.stack([xp[:, :, 0:W, :], xp[:, :, 1:W + 1, :]], axis=1)   # (B,2,H+1,W,C)
    xs = xs.astype(jnp.bfloat16).reshape(B, 2, (H + 1) * W, C_in)

    kernel = functools.partial(_deconv_bn_relu_kernel, H=H, W=W)

    # Explicit VMEM budget: double-buffered image + output blocks, plus weights.
    xs_block = 2 * (H + 1) * W * C_in * 2
    out_block = HW * n_pad * 4
    vmem = 2 * (xs_block + out_block) + w_big.size * 2 + 4 * n_pad + (2 << 20)

    out = pl.pallas_call(
        kernel,
        out_shape=jax.ShapeDtypeStruct((B, HW, n_pad), jnp.float32),
        grid=(B,),
        in_specs=[
            pl.BlockSpec((1, 2, (H + 1) * W, C_in), lambda b: (b, 0, 0, 0)),
            pl.BlockSpec((4, C_in, n_pad), lambda b: (0, 0, 0)),
            pl.BlockSpec((1, n_pad), lambda b: (0, 0)),
        ],
        out_specs=pl.BlockSpec((1, HW, n_pad), lambda b: (b, 0, 0)),
        compiler_params=pltpu.CompilerParams(
            # Batch axis is independent -> v7x can shard images over its 2 TCs.
            dimension_semantics=("parallel",),
            vmem_limit_bytes=int(min(max(vmem, 32 << 20), 64 << 20)),
        ),
    )(xs, w_big, bias_big)

    # Drop N padding, interleave the four output parities, return NCHW.
    out = out[:, :, :4 * c_out].reshape(B, H, W, 2, 2, c_out)     # (b,i,j,rh,rw,co)
    out = jnp.transpose(out, (0, 1, 3, 2, 4, 5)).reshape(B, 2 * H, 2 * W, c_out)
    return jnp.transpose(out, (0, 3, 1, 2))                       # NCHW (module contract)


# --------------------------------------------------------------------------- #
# Pure-JAX/XLA reference: ConvTranspose2d -> BatchNorm2d(eval) -> ReLU.
# --------------------------------------------------------------------------- #
def reference_forward(x, p):
    w = p["w"]                                                    # (C_in, C_out, 3, 3)
    wt = jnp.transpose(jnp.flip(w, axis=(2, 3)), (1, 0, 2, 3))    # (C_out, C_in, 3, 3)
    y = lax.conv_general_dilated(
        x, wt,
        window_strides=(1, 1),
        padding=[(1, 2), (1, 2)],          # (k-1-p, k-1-p+output_padding)
        lhs_dilation=(2, 2),
        dimension_numbers=("NCHW", "OIHW", "NCHW"))
    y = y + p["b"][None, :, None, None]
    scale = p["gamma"] / jnp.sqrt(p["var"] + p["eps"])
    y = (y - p["mean"][None, :, None, None]) * scale[None, :, None, None] \
        + p["beta"][None, :, None, None]
    return jnp.maximum(y, 0.0)


if __name__ == "__main__":
    key = jax.random.PRNGKey(0)
    B, C_IN, C_OUT, H, W = 2, 4, 8, 16, 16
    ks = jax.random.split(key, 7)

    def rnd(k, shape, scale=0.1):
        return (scale * jax.random.normal(k, shape)).astype(jnp.float32)

    params = {
        # ConvTranspose2d weight layout: (in_channels, out_channels, kH, kW)
        "w": rnd(ks[0], (C_IN, C_OUT, 3, 3)),
        "b": rnd(ks[1], (C_OUT,)),
        # BatchNorm2d affine params + running statistics (inference mode)
        "gamma": (1.0 + 0.1 * jax.random.normal(ks[2], (C_OUT,))).astype(jnp.float32),
        "beta": rnd(ks[3], (C_OUT,)),
        "mean": rnd(ks[4], (C_OUT,)),
        "var": jax.random.uniform(ks[5], (C_OUT,), minval=0.5, maxval=1.5).astype(jnp.float32),
        "eps": jnp.float32(1e-5),
    }
    # TODO(synk): BatchNorm2d training-mode batch statistics are not computed
    # in-kernel; inference-mode running stats are folded into the GEMM.

    x = rnd(ks[6], (B, C_IN, H, W), 1.0)

    prep, c_out = prepare_params(params)          # one-time weight prep (hoisted)
    out = jax.block_until_ready(deconv2d_block_forward(x, prep, c_out=c_out))
    ref = reference_forward(x, params)

    assert out.shape == (B, C_OUT, 2 * H, 2 * W), out.shape
    # bf16 MXU operands with f32 accumulation -> slightly widened tolerance.
    assert jnp.allclose(out, ref, atol=2e-2, rtol=1e-2), \
        float(jnp.max(jnp.abs(out - ref)))
    print("KERNEL_OK")
</pallas_src>

<mosaic_0001>
module attributes {stable_mosaic.version = 11 : i64} {
  func.func @_deconv_bn_relu_kernel(%arg0: i32, %arg1: memref<1x2x272x4xbf16, #tpu.memory_space<vmem>>, %arg2: memref<4x4x128xbf16, #tpu.memory_space<vmem>>, %arg3: memref<1x128xf32, #tpu.memory_space<vmem>>, %arg4: memref<1x256x128xf32, #tpu.memory_space<vmem>>) attributes {dimension_semantics = [#tpu.dimension_semantics<parallel>], iteration_bounds = array<i64: 2>, scalar_prefetch = 0 : i64, scratch_operands = 0 : i64, tpu.core_type = #tpu.core_type<tc>, window_params = [{transform_indices = @transform_0, window_bounds = array<i64: 1, 2, 272, 4>}, {pipeline_mode = #tpu.pipeline_mode<synchronous>, transform_indices = @transform_1, window_bounds = array<i64: 4, 4, 128>}, {pipeline_mode = #tpu.pipeline_mode<synchronous>, transform_indices = @transform_2, window_bounds = array<i64: 1, 128>}, {transform_indices = @transform_3, window_bounds = array<i64: 1, 256, 128>}]} {
    %c0 = arith.constant 0 : index
    %c0_0 = arith.constant 0 : index
    %c0_1 = arith.constant 0 : index
    %c0_2 = arith.constant 0 : index
    %0 = vector.load %arg1[%c0, %c0_0, %c0_1, %c0_2] : memref<1x2x272x4xbf16, #tpu.memory_space<vmem>>, vector<1x1x256x4xbf16>
    %1 = vector.shape_cast %0 : vector<1x1x256x4xbf16> to vector<256x4xbf16>
    %c0_3 = arith.constant 0 : index
    %c0_4 = arith.constant 0 : index
    %c0_5 = arith.constant 0 : index
    %2 = vector.load %arg2[%c0_3, %c0_4, %c0_5] : memref<4x4x128xbf16, #tpu.memory_space<vmem>>, vector<1x4x128xbf16>
    %3 = vector.shape_cast %2 : vector<1x4x128xbf16> to vector<4x128xbf16>
    %cst = arith.constant dense<0.000000e+00> : vector<256x128xf32>
    %4 = tpu.matmul %1, %3, %cst {dimension_numbers = #tpu.dot_dimension_numbers<[1], [0], [0], [1], [0, 0, 1, 1], [], []>} : vector<256x4xbf16>, vector<4x128xbf16>, vector<256x128xf32> -> vector<256x128xf32>
    %c0_6 = arith.constant 0 : index
    %c1 = arith.constant 1 : index
    %c0_7 = arith.constant 0 : index
    %c0_8 = arith.constant 0 : index
    %5 = vector.load %arg1[%c0_6, %c1, %c0_7, %c0_8] : memref<1x2x272x4xbf16, #tpu.memory_space<vmem>>, vector<1x1x256x4xbf16>
    %6 = vector.shape_cast %5 : vector<1x1x256x4xbf16> to vector<256x4xbf16>
    %c1_9 = arith.constant 1 : index
    %c0_10 = arith.constant 0 : index
    %c0_11 = arith.constant 0 : index
    %7 = vector.load %arg2[%c1_9, %c0_10, %c0_11] : memref<4x4x128xbf16, #tpu.memory_space<vmem>>, vector<1x4x128xbf16>
    %8 = vector.shape_cast %7 : vector<1x4x128xbf16> to vector<4x128xbf16>
    %cst_12 = arith.constant dense<0.000000e+00> : vector<256x128xf32>
    %9 = tpu.matmul %6, %8, %cst_12 {dimension_numbers = #tpu.dot_dimension_numbers<[1], [0], [0], [1], [0, 0, 1, 1], [], []>} : vector<256x4xbf16>, vector<4x128xbf16>, vector<256x128xf32> -> vector<256x128xf32>
    %10 = arith.addf %4, %9 : vector<256x128xf32>
    %c0_13 = arith.constant 0 : index
    %c0_14 = arith.constant 0 : index
    %c16 = arith.constant 16 : index
    %c0_15 = arith.constant 0 : index
    %11 = vector.load %arg1[%c0_13, %c0_14, %c16, %c0_15] : memref<1x2x272x4xbf16, #tpu.memory_space<vmem>>, vector<1x1x256x4xbf16>
    %12 = vector.shape_cast %11 : vector<1x1x256x4xbf16> to vector<256x4xbf16>
    %c2 = arith.constant 2 : index
    %c0_16 = arith.constant 0 : index
    %c0_17 = arith.constant 0 : index
    %13 = vector.load %arg2[%c2, %c0_16, %c0_17] : memref<4x4x128xbf16, #tpu.memory_space<vmem>>, vector<1x4x128xbf16>
    %14 = vector.shape_cast %13 : vector<1x4x128xbf16> to vector<4x128xbf16>
    %cst_18 = arith.constant dense<0.000000e+00> : vector<256x128xf32>
    %15 = tpu.matmul %12, %14, %cst_18 {dimension_numbers = #tpu.dot_dimension_numbers<[1], [0], [0], [1], [0, 0, 1, 1], [], []>} : vector<256x4xbf16>, vector<4x128xbf16>, vector<256x128xf32> -> vector<256x128xf32>
    %16 = arith.addf %10, %15 : vector<256x128xf32>
    %c0_19 = arith.constant 0 : index
    %c1_20 = arith.constant 1 : index
    %c16_21 = arith.constant 16 : index
    %c0_22 = arith.constant 0 : index
    %17 = vector.load %arg1[%c0_19, %c1_20, %c16_21, %c0_22] : memref<1x2x272x4xbf16, #tpu.memory_space<vmem>>, vector<1x1x256x4xbf16>
    %18 = vector.shape_cast %17 : vector<1x1x256x4xbf16> to vector<256x4xbf16>
    %c3 = arith.constant 3 : index
    %c0_23 = arith.constant 0 : index
    %c0_24 = arith.constant 0 : index
    %19 = vector.load %arg2[%c3, %c0_23, %c0_24] : memref<4x4x128xbf16, #tpu.memory_space<vmem>>, vector<1x4x128xbf16>
    %20 = vector.shape_cast %19 : vector<1x4x128xbf16> to vector<4x128xbf16>
    %cst_25 = arith.constant dense<0.000000e+00> : vector<256x128xf32>
    %21 = tpu.matmul %18, %20, %cst_25 {dimension_numbers = #tpu.dot_dimension_numbers<[1], [0], [0], [1], [0, 0, 1, 1], [], []>} : vector<256x4xbf16>, vector<4x128xbf16>, vector<256x128xf32> -> vector<256x128xf32>
    %22 = arith.addf %16, %21 : vector<256x128xf32>
    %c0_26 = arith.constant 0 : index
    %c0_27 = arith.constant 0 : index
    %23 = vector.load %arg3[%c0_26, %c0_27] : memref<1x128xf32, #tpu.memory_space<vmem>>, vector<1x128xf32>
    %24 = vector.broadcast %23 : vector<1x128xf32> to vector<256x128xf32>
    %25 = arith.addf %22, %24 : vector<256x128xf32>
    %cst_28 = arith.constant 0.000000e+00 : f32
    %26 = vector.broadcast %cst_28 : f32 to vector<256x128xf32>
    %27 = arith.maximumf %25, %26 : vector<256x128xf32>
    %c0_29 = arith.constant 0 : index
    %c0_30 = arith.constant 0 : index
    %c0_31 = arith.constant 0 : index
    %28 = vector.load %arg4[%c0_29, %c0_30, %c0_31] : memref<1x256x128xf32, #tpu.memory_space<vmem>>, vector<1x256x128xf32>
    %29 = vector.shape_cast %28 : vector<1x256x128xf32> to vector<256x128xf32>
    %30 = vector.shape_cast %27 : vector<256x128xf32> to vector<1x256x128xf32>
    tpu.vector_store %arg4[%c0_29, %c0_30, %c0_31], %30 {strides = array<i32>} : memref<1x256x128xf32, #tpu.memory_space<vmem>>, vector<1x256x128xf32>,
    return
  }
  func.func @transform_0(%arg0: i32) -> (i32, i32, i32, i32) {
    %c0_i32 = arith.constant 0 : i32
    %c0_i32_0 = arith.constant 0 : i32
    %c0_i32_1 = arith.constant 0 : i32
    %c0_i32_2 = arith.constant 0 : i32
    return %arg0, %c0_i32, %c0_i32_0, %c0_i32_1 : i32, i32, i32, i32
  }
  func.func @transform_1(%arg0: i32) -> (i32, i32, i32) {
    %c0_i32 = arith.constant 0 : i32
    %c0_i32_0 = arith.constant 0 : i32
    %c0_i32_1 = arith.constant 0 : i32
    %c0_i32_2 = arith.constant 0 : i32
    return %c0_i32, %c0_i32_0, %c0_i32_1 : i32, i32, i32
  }
  func.func @transform_2(%arg0: i32) -> (i32, i32) {
    %c0_i32 = arith.constant 0 : i32
    %c0_i32_0 = arith.constant 0 : i32
    %c0_i32_1 = arith.constant 0 : i32
    return %c0_i32, %c0_i32_0 : i32, i32
  }
  func.func @transform_3(%arg0: i32) -> (i32, i32, i32) {
    %c0_i32 = arith.constant 0 : i32
    %c0_i32_0 = arith.constant 0 : i32
    %c0_i32_1 = arith.constant 0 : i32
    return %arg0, %c0_i32, %c0_i32_0 : i32, i32, i32
  }
}

</mosaic_0001>

<llo_original>
// kernel: deconv2d_block_forward.1
$region0: #{deconv2d_block_forward.1}
  #allocation0 [shape = 'u32[]', space=smem, size = 0x4, offset = 0x4, fixed_abs, tag = 'smem constant byte address 0x4 - core index']
  #allocation1 [shape = 'u32[144,128]{1,0:T(1,128)}', space=vmem, size = 0x12000, scoped, tag = 'internal scratch']
  %s0 = inlined_call_operand.vmem [shape: bf16[2,2,272,4], index: 0, kind: input, shape index: {}]
  %s1 = inlined_call_operand.vmem [shape: bf16[4,4,128], index: 1, kind: input, shape index: {}]
  %s2 = inlined_call_operand.vmem [shape: f32[1,128], index: 2, kind: input, shape index: {}]
  %s3 = inlined_call_operand.vmem [shape: f32[2,256,128], index: 3, kind: output, shape index: {}]
  %s4 = sld [smem:[#allocation0]]
  $region45: #{deconv2d_block_forward.1} parent=0
    _
  %s6 = ssub.s32 1, %s4
  %s7 = scalar_select 0, %s6, %s4
  loop: start=0, step=1, limit=4
  $region2: #{deconv2d_block_forward.1} parent=0 // loop_pre_header
    _
  $region3: #{deconv2d_block_forward.1} parent=0 // loop_header
    %s9 = sphi 0, %s13
    %p10 = scmp.ge.s32.totalorder %s9, 4
    %s19 = sphi 0, %s21
    %s22 = sphi 0, %s19
    %s23 = sphi 0, %s22
    %s39 = sphi 0, %s23
    %s43 = sphi 0, %s43
    %s45 = sphi 0, %s43
    %s46 = sphi 0, %s45
    %s60 = sphi 0, %s46
    %s64 = sphi 0, %s64
    %s66 = sphi 0, %s64
    %s67 = sphi 0, %s66
    %s81 = sphi 0, %s67
    %s87 = sphi 0, %s89
    %s90 = sphi 0, %s87
    %s91 = sphi 0, %s90
    %s107 = sphi 0, %s91
  $region4: #{deconv2d_block_forward.1} parent=0 // loop_header_branch
    %12 = sbr.rel (%p10) target = $region8
  $region5: #{deconv2d_block_forward.1} parent=0 // loop_body
    %s14 = ssub.s32 %s9, 1
    %s15 = ssub.s32 %s9, 2
    %s16 = sadd.s32 %s9, 1
    %s17 = ssub.s32 %s9, %s16
    %p18 = scmp.eq.s32.totalorder %s17, 0
    %s20 = sadd.s32 %s19, 1
    %s21 = scalar_select %p18, %s19, %s20
    %p24 = pneg %p18
    %p25 = scmp.eq.s32.totalorder %s9, 1
    %p26 = por %p24, %p25
    %p27 = scmp.ne.s32.totalorder %s19, %s22
    %p28 = scmp.eq.s32.totalorder %s9, 0
    %p29 = por %p27, %p28
    %p30 = scmp.ne.s32.totalorder %s19, %s22
    %p31 = scmp.eq.s32.totalorder %s14, 1
    %p32 = por %p30, %p31
    %p33 = scmp.ne.s32.totalorder %s22, %s23
    %p34 = scmp.eq.s32.totalorder %s14, 0
    %p35 = por %p33, %p34
    %p36 = scmp.ne.s32.totalorder %s22, %s23
    %p37 = scmp.eq.s32.totalorder %s15, 1
    %p38 = por %p36, %p37
    %p40 = scmp.ne.s32.totalorder %s23, %s39
    %p41 = scmp.eq.s32.totalorder %s15, 0
    %p42 = por %p40, %p41
    %s44 = sadd.s32 %s43, 1
    %p47 = scmp.eq.s32.totalorder %s9, 1
    %p48 = scmp.ne.s32.totalorder %s43, %s45
    %p49 = scmp.eq.s32.totalorder %s9, 0
    %p50 = por %p48, %p49
    %p51 = scmp.ne.s32.totalorder %s43, %s45
    %p52 = scmp.eq.s32.totalorder %s14, 1
    %p53 = por %p51, %p52
    %p54 = scmp.ne.s32.totalorder %s45, %s46
    %p55 = scmp.eq.s32.totalorder %s14, 0
    %p56 = por %p54, %p55
    %p57 = scmp.ne.s32.totalorder %s45, %s46
    %p58 = scmp.eq.s32.totalorder %s15, 1
    %p59 = por %p57, %p58
    %p61 = scmp.ne.s32.totalorder %s46, %s60
    %p62 = scmp.eq.s32.totalorder %s15, 0
    %p63 = por %p61, %p62
    %s65 = sadd.s32 %s64, 1
    %p68 = scmp.eq.s32.totalorder %s9, 1
    %p69 = scmp.ne.s32.totalorder %s64, %s66
    %p70 = scmp.eq.s32.totalorder %s9, 0
    %p71 = por %p69, %p70
    %p72 = scmp.ne.s32.totalorder %s64, %s66
    %p73 = scmp.eq.s32.totalorder %s14, 1
    %p74 = por %p72, %p73
    %p75 = scmp.ne.s32.totalorder %s66, %s67
    %p76 = scmp.eq.s32.totalorder %s14, 0
    %p77 = por %p75, %p76
    %p78 = scmp.ne.s32.totalorder %s66, %s67
    %p79 = scmp.eq.s32.totalorder %s15, 1
    %p80 = por %p78, %p79
    %p82 = scmp.ne.s32.totalorder %s67, %s81
    %p83 = scmp.eq.s32.totalorder %s15, 0
    %p84 = por %p82, %p83
    %s85 = ssub.s32 %s9, %s16
    %p86 = scmp.eq.s32.totalorder %s85, 0
    %s88 = sadd.s32 %s87, 1
    %s89 = scalar_select %p86, %s87, %s88
    %p92 = pneg %p86
    %p93 = scmp.eq.s32.totalorder %s9, 1
    %p94 = por %p92, %p93
    %p95 = scmp.ne.s32.totalorder %s87, %s90
    %p96 = scmp.eq.s32.totalorder %s9, 0
    %p97 = por %p95, %p96
    %p98 = scmp.ne.s32.totalorder %s87, %s90
    %p99 = scmp.eq.s32.totalorder %s14, 1
    %p100 = por %p98, %p99
    %p101 = scmp.ne.s32.totalorder %s90, %s91
    %p102 = scmp.eq.s32.totalorder %s14, 0
    %p103 = por %p101, %p102
    %p104 = scmp.ne.s32.totalorder %s90, %s91
    %p105 = scmp.eq.s32.totalorder %s15, 1
    %p106 = por %p104, %p105
    %p108 = scmp.ne.s32.totalorder %s91, %s107
    %p109 = scmp.eq.s32.totalorder %s15, 0
    %p110 = por %p108, %p109
    %p111 = scmp.le.s32.totalorder 1, %s9
    %p112 = scmp.lt.s32.totalorder %s9, 3
    %p113 = pnand %p111, %p112
    %p114 = pneg %p113
    // Predicated region
    $region9: #{deconv2d_block_forward.1} parent=5 // pred_check
      _
    $region10: #{deconv2d_block_forward.1} parent=5 // pred_check_branch
      %116 = sbr.rel (%p113) target = $region12
    $region11: #{deconv2d_block_forward.1} parent=5 // pred_region
      %s117 = ssub.s32 %s9, 1
      // Predicated region
      $region13: #{deconv2d_block_forward.1} parent=11 // pred_check
        %p118 = pneg %p56
      $region14: #{deconv2d_block_forward.1} parent=11 // pred_check_branch
        %120 = sbr.rel (%p118) target = $region16
      $region15: #{deconv2d_block_forward.1} parent=11 // pred_region
        _
      $region16: #{deconv2d_block_forward.1} parent=11 // pred_fallthru
        _
      // Predicated region
      $region17: #{deconv2d_block_forward.1} parent=11 // pred_check
        %p121 = pneg %p77
      $region18: #{deconv2d_block_forward.1} parent=11 // pred_check_branch
        %123 = sbr.rel (%p121) target = $region20
      $region19: #{deconv2d_block_forward.1} parent=11 // pred_region
        _
      $region20: #{deconv2d_block_forward.1} parent=11 // pred_fallthru
        _
    $region12: #{deconv2d_block_forward.1} parent=5 // pred_fallthru
      _
    %p124 = scmp.lt.s32.totalorder %s9, 2
    // Predicated region
    $region21: #{deconv2d_block_forward.1} parent=5 // pred_check
      %p125 = pneg %p124
    $region22: #{deconv2d_block_forward.1} parent=5 // pred_check_branch
      %127 = sbr.rel (%p125) target = $region24
    $region23: #{deconv2d_block_forward.1} parent=5 // pred_region
      // Predicated region
      $region25: #{deconv2d_block_forward.1} parent=23 // pred_check
        %p128 = pneg %p29
      $region26: #{deconv2d_block_forward.1} parent=23 // pred_check_branch
        %130 = sbr.rel (%p128) target = $region28
      $region27: #{deconv2d_block_forward.1} parent=23 // pred_region
        %p131 = scmp.lt.s32.totalorder %s9, 1
        %s132 = scalar_select %p131, %s9, 1
        %s133 = smul.addr %s132, 68
        %s134 = smul.addr %s133, 4
        %s135 = scalar_lea.vmem %s0, %s134
      $region28: #{deconv2d_block_forward.1} parent=23 // pred_fallthru
        _
    $region24: #{deconv2d_block_forward.1} parent=5 // pred_fallthru
      _
    %p136 = scmp.le.s32.totalorder 1, %s9
    %p137 = scmp.lt.s32.totalorder %s9, 3
    %p138 = pnand %p136, %p137
    %p139 = pneg %p138
    // Predicated region
    $region29: #{deconv2d_block_forward.1} parent=5 // pred_check
      _
    $region30: #{deconv2d_block_forward.1} parent=5 // pred_check_branch
      %141 = sbr.rel (%p138) target = $region32
    $region31: #{deconv2d_block_forward.1} parent=5 // pred_region
      %s142 = ssub.s32 %s9, 1
      %p143 = scmp.lt.s32.totalorder %s14, 1
      %s144 = scalar_select %p143, %s14, 1
      %s145 = smul.addr %s144, 68
      %s146 = smul.addr %s145, 4
      %s147 = scalar_lea.vmem %s0, %s146
      %p148 = pneg %p35
      %p149 = pneg %p32
      %p150 = pneg %p56
      %p151 = pneg %p53
      %p152 = pneg %p77
      %p153 = pneg %p74
      %p154 = pneg %p103
      %p155 = pneg %p100
      %p156 = scmp.lt.s32.totalorder %s14, 1
      %s157 = scalar_select %p156, %s14, 1
      %s158 = smul.addr %s157, 32
      %s159 = smul.addr %s158, 8
      %s160 = scalar_lea.vmem %s3, %s159
      %p161 = scmp.lt.s32.totalorder %s14, 1
      %s162 = scalar_select %p161, %s14, 1
      %s163 = smul.addr %s162, 68
      %s164 = smul.addr %s163, 4
      %s165 = scalar_lea.vmem %s0, %s164
      %p166 = scmp.lt.s32.totalorder %s14, 1
      %s167 = scalar_select %p166, %s14, 1
      %s168 = smul.addr %s167, 32
      %s169 = smul.addr %s168, 8
      %s170 = scalar_lea.vmem %s3, %s169
      %v172 = vld [vmem:[%s165] sm:$0xf]
      %v173 = vld [vmem:[%s165 + $0x4] sm:$0xf]
      %v174 = vld [vmem:[%s165 + $0x8] sm:$0xf]
      %v175 = vld [vmem:[%s165 + $0xc] sm:$0xf]
      %v176 = vld [vmem:[%s165 + $0x10] sm:$0xf]
      %v177 = vld [vmem:[%s165 + $0x14] sm:$0xf]
      %v178 = vld [vmem:[%s165 + $0x18] sm:$0xf]
      %v179 = vld [vmem:[%s165 + $0x1c] sm:$0xf]
      %v180 = vld [vmem:[%s165 + $0x20] sm:$0xf]
      %v181 = vld [vmem:[%s165 + $0x24] sm:$0xf]
      %v182 = vld [vmem:[%s165 + $0x28] sm:$0xf]
      %v183 = vld [vmem:[%s165 + $0x2c] sm:$0xf]
      %v184 = vld [vmem:[%s165 + $0x30] sm:$0xf]
      %v185 = vld [vmem:[%s165 + $0x34] sm:$0xf]
      %v186 = vld [vmem:[%s165 + $0x38] sm:$0xf]
      %v187 = vld [vmem:[%s165 + $0x3c] sm:$0xf]
      %v188 = vld [vmem:[%s165 + $0x40] sm:$0xf]
      %v189 = vld [vmem:[%s165 + $0x44] sm:$0xf]
      %v190 = vld [vmem:[%s165 + $0x48] sm:$0xf]
      %v191 = vld [vmem:[%s165 + $0x4c] sm:$0xf]
      %v192 = vld [vmem:[%s165 + $0x50] sm:$0xf]
      %v193 = vld [vmem:[%s165 + $0x54] sm:$0xf]
      %v194 = vld [vmem:[%s165 + $0x58] sm:$0xf]
      %v195 = vld [vmem:[%s165 + $0x5c] sm:$0xf]
      %v196 = vld [vmem:[%s165 + $0x60] sm:$0xf]
      %v197 = vld [vmem:[%s165 + $0x64] sm:$0xf]
      %v198 = vld [vmem:[%s165 + $0x68] sm:$0xf]
      %v199 = vld [vmem:[%s165 + $0x6c] sm:$0xf]
      %v200 = vld [vmem:[%s165 + $0x70] sm:$0xf]
      %v201 = vld [vmem:[%s165 + $0x74] sm:$0xf]
      %v202 = vld [vmem:[%s165 + $0x78] sm:$0xf]
      %v203 = vld [vmem:[%s165 + $0x7c] sm:$0xf]
      %v204 = vld [vmem:[%s1] sm:$0x3]
      %s205 = scalar_lea.vmem %s165, 136
      %v206 = vld [vmem:[%s205] sm:$0xf]
      %v207 = vld [vmem:[%s205 + $0x4] sm:$0xf]
      %v208 = vld [vmem:[%s205 + $0x8] sm:$0xf]
      %v209 = vld [vmem:[%s205 + $0xc] sm:$0xf]
      %v210 = vld [vmem:[%s205 + $0x10] sm:$0xf]
      %v211 = vld [vmem:[%s205 + $0x14] sm:$0xf]
      %v212 = vld [vmem:[%s205 + $0x18] sm:$0xf]
      %v213 = vld [vmem:[%s205 + $0x1c] sm:$0xf]
      %v214 = vld [vmem:[%s205 + $0x20] sm:$0xf]
      %v215 = vld [vmem:[%s205 + $0x24] sm:$0xf]
      %v216 = vld [vmem:[%s205 + $0x28] sm:$0xf]
      %v217 = vld [vmem:[%s205 + $0x2c] sm:$0xf]
      %v218 = vld [vmem:[%s205 + $0x30] sm:$0xf]
      %v219 = vld [vmem:[%s205 + $0x34] sm:$0xf]
      %v220 = vld [vmem:[%s205 + $0x38] sm:$0xf]
      %v221 = vld [vmem:[%s205 + $0x3c] sm:$0xf]
      %v222 = vld [vmem:[%s205 + $0x40] sm:$0xf]
      %v223 = vld [vmem:[%s205 + $0x44] sm:$0xf]
      %v224 = vld [vmem:[%s205 + $0x48] sm:$0xf]
      %v225 = vld [vmem:[%s205 + $0x4c] sm:$0xf]
      %v226 = vld [vmem:[%s205 + $0x50] sm:$0xf]
      %v227 = vld [vmem:[%s205 + $0x54] sm:$0xf]
      %v228 = vld [vmem:[%s205 + $0x58] sm:$0xf]
      %v229 = vld [vmem:[%s205 + $0x5c] sm:$0xf]
      %v230 = vld [vmem:[%s205 + $0x60] sm:$0xf]
      %v231 = vld [vmem:[%s205 + $0x64] sm:$0xf]
      %v232 = vld [vmem:[%s205 + $0x68] sm:$0xf]
      %v233 = vld [vmem:[%s205 + $0x6c] sm:$0xf]
      %v234 = vld [vmem:[%s205 + $0x70] sm:$0xf]
      %v235 = vld [vmem:[%s205 + $0x74] sm:$0xf]
      %v236 = vld [vmem:[%s205 + $0x78] sm:$0xf]
      %v237 = vld [vmem:[%s205 + $0x7c] sm:$0xf]
      %s238 = scalar_lea.vmem %s1, 2
      %v239 = vld [vmem:[%s238] sm:$0x3]
      %v272 = vunpack.c.l.b16 %v206
      %v273 = vunpack.c.l.b16 %v207
      %v274 = vunpack.c.l.b16 %v208
      %v275 = vunpack.c.l.b16 %v209
      %v276 = vunpack.c.l.b16 %v210
      %v277 = vunpack.c.l.b16 %v211
      %v278 = vunpack.c.l.b16 %v212
      %v279 = vunpack.c.l.b16 %v213
      %v280 = vunpack.c.l.b16 %v214
      %v281 = vunpack.c.l.b16 %v215
      %v282 = vunpack.c.l.b16 %v216
      %v283 = vunpack.c.l.b16 %v217
      %v284 = vunpack.c.l.b16 %v218
      %v285 = vunpack.c.l.b16 %v219
      %v286 = vunpack.c.l.b16 %v220
      %v287 = vunpack.c.l.b16 %v221
      %v288 = vunpack.c.l.b16 %v222
      %v289 = vunpack.c.l.b16 %v223
      %v290 = vunpack.c.l.b16 %v224
      %v291 = vunpack.c.l.b16 %v225
      %v292 = vunpack.c.l.b16 %v226
      %v293 = vunpack.c.l.b16 %v227
      %v294 = vunpack.c.l.b16 %v228
      %v295 = vunpack.c.l.b16 %v229
      %v296 = vunpack.c.l.b16 %v230
      %v297 = vunpack.c.l.b16 %v231
      %v298 = vunpack.c.l.b16 %v232
      %v299 = vunpack.c.l.b16 %v233
      %v300 = vunpack.c.l.b16 %v234
      %v301 = vunpack.c.l.b16 %v235
      %v302 = vunpack.c.l.b16 %v236
      %v303 = vunpack.c.l.b16 %v237
      %v304 = vpack.c.b16 %v273, %v272
      %v305 = vpack.c.b16 %v275, %v274
      %v306 = vpack.c.b16 %v277, %v276
      %v307 = vpack.c.b16 %v279, %v278
      %v308 = vpack.c.b16 %v281, %v280
      %v309 = vpack.c.b16 %v283, %v282
      %v310 = vpack.c.b16 %v285, %v284
      %v311 = vpack.c.b16 %v287, %v286
      %v312 = vpack.c.b16 %v289, %v288
      %v313 = vpack.c.b16 %v291, %v290
      %v314 = vpack.c.b16 %v293, %v292
      %v315 = vpack.c.b16 %v295, %v294
      %v316 = vpack.c.b16 %v297, %v296
      %v317 = vpack.c.b16 %v299, %v298
      %v318 = vpack.c.b16 %v301, %v300
      %v319 = vpack.c.b16 %v303, %v302
      %vm320 = vcmask 31744
      %v322 = vsel %vm320, %v304, 0
      %v325 = vsel %vm320, %v305, 0
      %v328 = vsel %vm320, %v306, 0
      %v331 = vsel %vm320, %v307, 0
      %v334 = vsel %vm320, %v308, 0
      %v337 = vsel %vm320, %v309, 0
      %v340 = vsel %vm320, %v310, 0
      %v343 = vsel %vm320, %v311, 0
      %v346 = vsel %vm320, %v312, 0
      %v349 = vsel %vm320, %v313, 0
      %v352 = vsel %vm320, %v314, 0
      %v355 = vsel %vm320, %v315, 0
      %v358 = vsel %vm320, %v316, 0
      %v361 = vsel %vm320, %v317, 0
      %v364 = vsel %vm320, %v318, 0
      %v367 = vsel %vm320, %v319, 0
      %vm369 = vcmask 1041408
      %v371 = vsel %vm369, %v239, 0
      %373 = vmatprep.subr.bf16.mxu0 0
      %374 = vmatpush1.bf16.msra.mxu0 0
      %375 = vmatprep.subr.bf16.mxu0 0
      %376 = vmatpush1.bf16.msra.mxu0 0
      %377 = vmatprep.subr.bf16.mxu0 0
      %378 = vmatpush1.bf16.msra.mxu0 0
      %379 = vmatprep.subr.bf16.mxu0 0
      %380 = vmatpush1.bf16.msra.mxu0 0
      %381 = vmatprep.subr.bf16.mxu0 0
      %382 = vmatpush1.bf16.msra.mxu0 0
      %383 = vmatprep.subr.bf16.mxu0 0
      %384 = vmatpush1.bf16.msra.mxu0 0
      %385 = vmatprep.subr.bf16.mxu0 0
      %386 = vmatpush1.bf16.msra.mxu0 0
      %387 = vmatprep.subr.bf16.mxu0 0
      %388 = vmatpush1.bf16.msra.mxu0 %v371
      %389 = vmatprep.subr.bf16.mxu0 0
      %390 = vmatpush2.bf16.msra.mxu0 0
      %391 = vmatprep.subr.bf16.mxu0 0
      %392 = vmatpush2.bf16.msra.mxu0 0
      %393 = vmatprep.subr.bf16.mxu0 0
      %394 = vmatpush2.bf16.msra.mxu0 0
      %395 = vmatprep.subr.bf16.mxu0 0
      %396 = vmatpush2.bf16.msra.mxu0 0
      %397 = vmatprep.subr.bf16.mxu0 0
      %398 = vmatpush2.bf16.msra.mxu0 0
      %399 = vmatprep.subr.bf16.mxu0 0
      %400 = vmatpush2.bf16.msra.mxu0 0
      %401 = vmatprep.subr.bf16.mxu0 0
      %402 = vmatpush2.bf16.msra.mxu0 0
      %403 = vmatprep.subr.bf16.mxu0 0
      %404 = vmatpush2.bf16.msra.mxu0 0
      %405 = vmatprep.mubr.bf16.mxu0 0
      %406 = vmatmul.mubr.bf16.gmra.mxu0 %v322
      %v407 = vpop.f32.mrf.mxu0
      %v408 = vadd.f32 0.0, %v407
      %v409 = vpop.f32.mrf.mxu0
      %v410 = vpop.f32.mrf.mxu0
      %v411 = vadd.f32 0.0, %v410
      %v412 = vpop.f32.mrf.mxu0
      %413 = vmatprep.mubr.bf16.mxu0 0
      %414 = vmatmul.mubr.bf16.gmra.mxu0 %v325
      %v415 = vpop.f32.mrf.mxu0
      %v416 = vadd.f32 0.0, %v415
      %v417 = vpop.f32.mrf.mxu0
      %v418 = vpop.f32.mrf.mxu0
      %v419 = vadd.f32 0.0, %v418
      %v420 = vpop.f32.mrf.mxu0
      %421 = vmatprep.mubr.bf16.mxu0 0
      %422 = vmatmul.mubr.bf16.gmra.mxu0 %v328
      %v423 = vpop.f32.mrf.mxu0
      %v424 = vadd.f32 0.0, %v423
      %v425 = vpop.f32.mrf.mxu0
      %v426 = vpop.f32.mrf.mxu0
      %v427 = vadd.f32 0.0, %v426
      %v428 = vpop.f32.mrf.mxu0
      %429 = vmatprep.mubr.bf16.mxu0 0
      %430 = vmatmul.mubr.bf16.gmra.mxu0 %v331
      %v431 = vpop.f32.mrf.mxu0
      %v432 = vadd.f32 0.0, %v431
      %v433 = vpop.f32.mrf.mxu0
      %v434 = vpop.f32.mrf.mxu0
      %v435 = vadd.f32 0.0, %v434
      %v436 = vpop.f32.mrf.mxu0
      %437 = vmatprep.mubr.bf16.mxu0 0
      %438 = vmatmul.mubr.bf16.gmra.mxu0 %v334
      %v439 = vpop.f32.mrf.mxu0
      %v440 = vadd.f32 0.0, %v439
      %v441 = vpop.f32.mrf.mxu0
      %v442 = vpop.f32.mrf.mxu0
      %v443 = vadd.f32 0.0, %v442
      %v444 = vpop.f32.mrf.mxu0
      %445 = vmatprep.mubr.bf16.mxu0 0
      %446 = vmatmul.mubr.bf16.gmra.mxu0 %v337
      %v447 = vpop.f32.mrf.mxu0
      %v448 = vadd.f32 0.0, %v447
      %v449 = vpop.f32.mrf.mxu0
      %v450 = vpop.f32.mrf.mxu0
      %v451 = vadd.f32 0.0, %v450
      %v452 = vpop.f32.mrf.mxu0
      %453 = vmatprep.mubr.bf16.mxu0 0
      %454 = vmatmul.mubr.bf16.gmra.mxu0 %v340
      %v455 = vpop.f32.mrf.mxu0
      %v456 = vadd.f32 0.0, %v455
      %v457 = vpop.f32.mrf.mxu0
      %v458 = vpop.f32.mrf.mxu0
      %v459 = vadd.f32 0.0, %v458
      %v460 = vpop.f32.mrf.mxu0
      %461 = vmatprep.mubr.bf16.mxu0 0
      %462 = vmatmul.mubr.bf16.gmra.mxu0 %v343
      %v463 = vpop.f32.mrf.mxu0
      %v464 = vadd.f32 0.0, %v463
      %v465 = vpop.f32.mrf.mxu0
      %v466 = vpop.f32.mrf.mxu0
      %v467 = vadd.f32 0.0, %v466
      %v468 = vpop.f32.mrf.mxu0
      %469 = vmatprep.mubr.bf16.mxu0 0
      %470 = vmatmul.mubr.bf16.gmra.mxu0 %v346
      %v471 = vpop.f32.mrf.mxu0
      %v472 = vadd.f32 0.0, %v471
      %v473 = vpop.f32.mrf.mxu0
      %v474 = vpop.f32.mrf.mxu0
      %v475 = vadd.f32 0.0, %v474
      %v476 = vpop.f32.mrf.mxu0
      %477 = vmatprep.mubr.bf16.mxu0 0
      %478 = vmatmul.mubr.bf16.gmra.mxu0 %v349
      %v479 = vpop.f32.mrf.mxu0
      %v480 = vadd.f32 0.0, %v479
      %v481 = vpop.f32.mrf.mxu0
      %v482 = vpop.f32.mrf.mxu0
      %v483 = vadd.f32 0.0, %v482
      %v484 = vpop.f32.mrf.mxu0
      %485 = vmatprep.mubr.bf16.mxu0 0
      %486 = vmatmul.mubr.bf16.gmra.mxu0 %v352
      %v487 = vpop.f32.mrf.mxu0
      %v488 = vadd.f32 0.0, %v487
      %v489 = vpop.f32.mrf.mxu0
      %v490 = vpop.f32.mrf.mxu0
      %v491 = vadd.f32 0.0, %v490
      %v492 = vpop.f32.mrf.mxu0
      %493 = vmatprep.mubr.bf16.mxu0 0
      %494 = vmatmul.mubr.bf16.gmra.mxu0 %v355
      %v495 = vpop.f32.mrf.mxu0
      %v496 = vadd.f32 0.0, %v495
      %v497 = vpop.f32.mrf.mxu0
      %v498 = vpop.f32.mrf.mxu0
      %v499 = vadd.f32 0.0, %v498
      %v500 = vpop.f32.mrf.mxu0
      %501 = vmatprep.mubr.bf16.mxu0 0
      %502 = vmatmul.mubr.bf16.gmra.mxu0 %v358
      %v503 = vpop.f32.mrf.mxu0
      %v504 = vadd.f32 0.0, %v503
      %v505 = vpop.f32.mrf.mxu0
      %v506 = vpop.f32.mrf.mxu0
      %v507 = vadd.f32 0.0, %v506
      %v508 = vpop.f32.mrf.mxu0
      %509 = vmatprep.mubr.bf16.mxu0 0
      %510 = vmatmul.mubr.bf16.gmra.mxu0 %v361
      %v511 = vpop.f32.mrf.mxu0
      %v512 = vadd.f32 0.0, %v511
      %v513 = vpop.f32.mrf.mxu0
      %v514 = vpop.f32.mrf.mxu0
      %v515 = vadd.f32 0.0, %v514
      %v516 = vpop.f32.mrf.mxu0
      %517 = vmatprep.mubr.bf16.mxu0 0
      %518 = vmatmul.mubr.bf16.gmra.mxu0 %v364
      %v519 = vpop.f32.mrf.mxu0
      %v520 = vadd.f32 0.0, %v519
      %v521 = vpop.f32.mrf.mxu0
      %v522 = vpop.f32.mrf.mxu0
      %v523 = vadd.f32 0.0, %v522
      %v524 = vpop.f32.mrf.mxu0
      %525 = vmatprep.mubr.bf16.mxu0 0
      %526 = vmatmul.mubr.bf16.gmra.mxu0 %v367
      %v527 = vpop.f32.mrf.mxu0
      %v528 = vadd.f32 0.0, %v527
      %v529 = vpop.f32.mrf.mxu0
      %v530 = vpop.f32.mrf.mxu0
      %v531 = vadd.f32 0.0, %v530
      %v532 = vpop.f32.mrf.mxu0
      %533 = vdwg.mxu0
      %v566 = vunpack.c.l.b16 %v172
      %v567 = vunpack.c.l.b16 %v173
      %v568 = vunpack.c.l.b16 %v174
      %v569 = vunpack.c.l.b16 %v175
      %v570 = vunpack.c.l.b16 %v176
      %v571 = vunpack.c.l.b16 %v177
      %v572 = vunpack.c.l.b16 %v178
      %v573 = vunpack.c.l.b16 %v179
      %v574 = vunpack.c.l.b16 %v180
      %v575 = vunpack.c.l.b16 %v181
      %v576 = vunpack.c.l.b16 %v182
      %v577 = vunpack.c.l.b16 %v183
      %v578 = vunpack.c.l.b16 %v184
      %v579 = vunpack.c.l.b16 %v185
      %v580 = vunpack.c.l.b16 %v186
      %v581 = vunpack.c.l.b16 %v187
      %v582 = vunpack.c.l.b16 %v188
      %v583 = vunpack.c.l.b16 %v189
      %v584 = vunpack.c.l.b16 %v190
      %v585 = vunpack.c.l.b16 %v191
      %v586 = vunpack.c.l.b16 %v192
      %v587 = vunpack.c.l.b16 %v193
      %v588 = vunpack.c.l.b16 %v194
      %v589 = vunpack.c.l.b16 %v195
      %v590 = vunpack.c.l.b16 %v196
      %v591 = vunpack.c.l.b16 %v197
      %v592 = vunpack.c.l.b16 %v198
      %v593 = vunpack.c.l.b16 %v199
      %v594 = vunpack.c.l.b16 %v200
      %v595 = vunpack.c.l.b16 %v201
      %v596 = vunpack.c.l.b16 %v202
      %v597 = vunpack.c.l.b16 %v203
      %v598 = vpack.c.b16 %v567, %v566
      %v599 = vpack.c.b16 %v569, %v568
      %v600 = vpack.c.b16 %v571, %v570
      %v601 = vpack.c.b16 %v573, %v572
      %v602 = vpack.c.b16 %v575, %v574
      %v603 = vpack.c.b16 %v577, %v576
      %v604 = vpack.c.b16 %v579, %v578
      %v605 = vpack.c.b16 %v581, %v580
      %v606 = vpack.c.b16 %v583, %v582
      %v607 = vpack.c.b16 %v585, %v584
      %v608 = vpack.c.b16 %v587, %v586
      %v609 = vpack.c.b16 %v589, %v588
      %v610 = vpack.c.b16 %v591, %v590
      %v611 = vpack.c.b16 %v593, %v592
      %v612 = vpack.c.b16 %v595, %v594
      %v613 = vpack.c.b16 %v597, %v596
      %v615 = vsel %vm320, %v598, 0
      %v618 = vsel %vm320, %v599, 0
      %v621 = vsel %vm320, %v600, 0
      %v624 = vsel %vm320, %v601, 0
      %v627 = vsel %vm320, %v602, 0
      %v630 = vsel %vm320, %v603, 0
      %v633 = vsel %vm320, %v604, 0
      %v636 = vsel %vm320, %v605, 0
      %v639 = vsel %vm320, %v606, 0
      %v642 = vsel %vm320, %v607, 0
      %v645 = vsel %vm320, %v608, 0
      %v648 = vsel %vm320, %v609, 0
      %v651 = vsel %vm320, %v610, 0
      %v654 = vsel %vm320, %v611, 0
      %v657 = vsel %vm320, %v612, 0
      %v660 = vsel %vm320, %v613, 0
      %v663 = vsel %vm369, %v204, 0
      %665 = vmatprep.subr.bf16.mxu0 0
      %666 = vmatpush1.bf16.msra.mxu0 0
      %667 = vmatprep.subr.bf16.mxu0 0
      %668 = vmatpush1.bf16.msra.mxu0 0
      %669 = vmatprep.subr.bf16.mxu0 0
      %670 = vmatpush1.bf16.msra.mxu0 0
      %671 = vmatprep.subr.bf16.mxu0 0
      %672 = vmatpush1.bf16.msra.mxu0 0
      %673 = vmatprep.subr.bf16.mxu0 0
      %674 = vmatpush1.bf16.msra.mxu0 0
      %675 = vmatprep.subr.bf16.mxu0 0
      %676 = vmatpush1.bf16.msra.mxu0 0
      %677 = vmatprep.subr.bf16.mxu0 0
      %678 = vmatpush1.bf16.msra.mxu0 0
      %679 = vmatprep.subr.bf16.mxu0 0
      %680 = vmatpush1.bf16.msra.mxu0 %v663
      %681 = vmatprep.subr.bf16.mxu0 0
      %682 = vmatpush2.bf16.msra.mxu0 0
      %683 = vmatprep.subr.bf16.mxu0 0
      %684 = vmatpush2.bf16.msra.mxu0 0
      %685 = vmatprep.subr.bf16.mxu0 0
      %686 = vmatpush2.bf16.msra.mxu0 0
      %687 = vmatprep.subr.bf16.mxu0 0
      %688 = vmatpush2.bf16.msra.mxu0 0
      %689 = vmatprep.subr.bf16.mxu0 0
      %690 = vmatpush2.bf16.msra.mxu0 0
      %691 = vmatprep.subr.bf16.mxu0 0
      %692 = vmatpush2.bf16.msra.mxu0 0
      %693 = vmatprep.subr.bf16.mxu0 0
      %694 = vmatpush2.bf16.msra.mxu0 0
      %695 = vmatprep.subr.bf16.mxu0 0
      %696 = vmatpush2.bf16.msra.mxu0 0
      %697 = vmatprep.mubr.bf16.mxu0 0
      %698 = vmatmul.mubr.bf16.gmra.mxu0 %v615
      %v699 = vpop.f32.mrf.mxu0
      %v700 = vadd.f32 %v408, %v699
      %v701 = vpop.f32.mrf.mxu0
      %v702 = vpop.f32.mrf.mxu0
      %v703 = vadd.f32 %v411, %v702
      %v704 = vpop.f32.mrf.mxu0
      %705 = vmatprep.mubr.bf16.mxu0 0
      %706 = vmatmul.mubr.bf16.gmra.mxu0 %v618
      %v707 = vpop.f32.mrf.mxu0
      %v708 = vadd.f32 %v416, %v707
      %v709 = vpop.f32.mrf.mxu0
      %v710 = vpop.f32.mrf.mxu0
      %v711 = vadd.f32 %v419, %v710
      %v712 = vpop.f32.mrf.mxu0
      %713 = vmatprep.mubr.bf16.mxu0 0
      %714 = vmatmul.mubr.bf16.gmra.mxu0 %v621
      %v715 = vpop.f32.mrf.mxu0
      %v716 = vadd.f32 %v424, %v715
      %v717 = vpop.f32.mrf.mxu0
      %v718 = vpop.f32.mrf.mxu0
      %v719 = vadd.f32 %v427, %v718
      %v720 = vpop.f32.mrf.mxu0
      %721 = vmatprep.mubr.bf16.mxu0 0
      %722 = vmatmul.mubr.bf16.gmra.mxu0 %v624
      %v723 = vpop.f32.mrf.mxu0
      %v724 = vadd.f32 %v432, %v723
      %v725 = vpop.f32.mrf.mxu0
      %v726 = vpop.f32.mrf.mxu0
      %v727 = vadd.f32 %v435, %v726
      %v728 = vpop.f32.mrf.mxu0
      %729 = vmatprep.mubr.bf16.mxu0 0
      %730 = vmatmul.mubr.bf16.gmra.mxu0 %v627
      %v731 = vpop.f32.mrf.mxu0
      %v732 = vadd.f32 %v440, %v731
      %v733 = vpop.f32.mrf.mxu0
      %v734 = vpop.f32.mrf.mxu0
      %v735 = vadd.f32 %v443, %v734
      %v736 = vpop.f32.mrf.mxu0
      %737 = vmatprep.mubr.bf16.mxu0 0
      %738 = vmatmul.mubr.bf16.gmra.mxu0 %v630
      %v739 = vpop.f32.mrf.mxu0
      %v740 = vadd.f32 %v448, %v739
      %v741 = vpop.f32.mrf.mxu0
      %v742 = vpop.f32.mrf.mxu0
      %v743 = vadd.f32 %v451, %v742
      %v744 = vpop.f32.mrf.mxu0
      %745 = vmatprep.mubr.bf16.mxu0 0
      %746 = vmatmul.mubr.bf16.gmra.mxu0 %v633
      %v747 = vpop.f32.mrf.mxu0
      %v748 = vadd.f32 %v456, %v747
      %v749 = vpop.f32.mrf.mxu0
      %v750 = vpop.f32.mrf.mxu0
      %v751 = vadd.f32 %v459, %v750
      %v752 = vpop.f32.mrf.mxu0
      %753 = vmatprep.mubr.bf16.mxu0 0
      %754 = vmatmul.mubr.bf16.gmra.mxu0 %v636
      %v755 = vpop.f32.mrf.mxu0
      %v756 = vadd.f32 %v464, %v755
      %v757 = vpop.f32.mrf.mxu0
      %v758 = vpop.f32.mrf.mxu0
      %v759 = vadd.f32 %v467, %v758
      %v760 = vpop.f32.mrf.mxu0
      %761 = vmatprep.mubr.bf16.mxu0 0
      %762 = vmatmul.mubr.bf16.gmra.mxu0 %v639
      %v763 = vpop.f32.mrf.mxu0
      %v764 = vadd.f32 %v472, %v763
      %v765 = vpop.f32.mrf.mxu0
      %v766 = vpop.f32.mrf.mxu0
      %v767 = vadd.f32 %v475, %v766
      %v768 = vpop.f32.mrf.mxu0
      %769 = vmatprep.mubr.bf16.mxu0 0
      %770 = vmatmul.mubr.bf16.gmra.mxu0 %v642
      %v771 = vpop.f32.mrf.mxu0
      %v772 = vadd.f32 %v480, %v771
      %v773 = vpop.f32.mrf.mxu0
      %v774 = vpop.f32.mrf.mxu0
      %v775 = vadd.f32 %v483, %v774
      %v776 = vpop.f32.mrf.mxu0
      %777 = vmatprep.mubr.bf16.mxu0 0
      %778 = vmatmul.mubr.bf16.gmra.mxu0 %v645
      %v779 = vpop.f32.mrf.mxu0
      %v780 = vadd.f32 %v488, %v779
      %v781 = vpop.f32.mrf.mxu0
      %v782 = vpop.f32.mrf.mxu0
      %v783 = vadd.f32 %v491, %v782
      %v784 = vpop.f32.mrf.mxu0
      %785 = vmatprep.mubr.bf16.mxu0 0
      %786 = vmatmul.mubr.bf16.gmra.mxu0 %v648
      %v787 = vpop.f32.mrf.mxu0
      %v788 = vadd.f32 %v496, %v787
      %v789 = vpop.f32.mrf.mxu0
      %v790 = vpop.f32.mrf.mxu0
      %v791 = vadd.f32 %v499, %v790
      %v792 = vpop.f32.mrf.mxu0
      %793 = vmatprep.mubr.bf16.mxu0 0
      %794 = vmatmul.mubr.bf16.gmra.mxu0 %v651
      %v795 = vpop.f32.mrf.mxu0
      %v796 = vadd.f32 %v504, %v795
      %v797 = vpop.f32.mrf.mxu0
      %v798 = vpop.f32.mrf.mxu0
      %v799 = vadd.f32 %v507, %v798
      %v800 = vpop.f32.mrf.mxu0
      %801 = vmatprep.mubr.bf16.mxu0 0
      %802 = vmatmul.mubr.bf16.gmra.mxu0 %v654
      %v803 = vpop.f32.mrf.mxu0
      %v804 = vadd.f32 %v512, %v803
      %v805 = vpop.f32.mrf.mxu0
      %v806 = vpop.f32.mrf.mxu0
      %v807 = vadd.f32 %v515, %v806
      %v808 = vpop.f32.mrf.mxu0
      %809 = vmatprep.mubr.bf16.mxu0 0
      %810 = vmatmul.mubr.bf16.gmra.mxu0 %v657
      %v811 = vpop.f32.mrf.mxu0
      %v812 = vadd.f32 %v520, %v811
      %v813 = vpop.f32.mrf.mxu0
      %v814 = vpop.f32.mrf.mxu0
      %v815 = vadd.f32 %v523, %v814
      %v816 = vpop.f32.mrf.mxu0
      %817 = vmatprep.mubr.bf16.mxu0 0
      %818 = vmatmul.mubr.bf16.gmra.mxu0 %v660
      %v819 = vpop.f32.mrf.mxu0
      %v820 = vadd.f32 %v528, %v819
      %v821 = vpop.f32.mrf.mxu0
      %v822 = vpop.f32.mrf.mxu0
      %v823 = vadd.f32 %v531, %v822
      %v824 = vpop.f32.mrf.mxu0
      %825 = vdwg.mxu0
      %v826 = vld [vmem:[%s165 + $0x8] sm:$0xf]
      %v827 = vld [vmem:[%s165 + $0xc] sm:$0xf]
      %v828 = vld [vmem:[%s165 + $0x10] sm:$0xf]
      %v829 = vld [vmem:[%s165 + $0x14] sm:$0xf]
      %v830 = vld [vmem:[%s165 + $0x18] sm:$0xf]
      %v831 = vld [vmem:[%s165 + $0x1c] sm:$0xf]
      %v832 = vld [vmem:[%s165 + $0x20] sm:$0xf]
      %v833 = vld [vmem:[%s165 + $0x24] sm:$0xf]
      %v834 = vld [vmem:[%s165 + $0x28] sm:$0xf]
      %v835 = vld [vmem:[%s165 + $0x2c] sm:$0xf]
      %v836 = vld [vmem:[%s165 + $0x30] sm:$0xf]
      %v837 = vld [vmem:[%s165 + $0x34] sm:$0xf]
      %v838 = vld [vmem:[%s165 + $0x38] sm:$0xf]
      %v839 = vld [vmem:[%s165 + $0x3c] sm:$0xf]
      %v840 = vld [vmem:[%s165 + $0x40] sm:$0xf]
      %v841 = vld [vmem:[%s165 + $0x44] sm:$0xf]
      %v842 = vld [vmem:[%s165 + $0x48] sm:$0xf]
      %v843 = vld [vmem:[%s165 + $0x4c] sm:$0xf]
      %v844 = vld [vmem:[%s165 + $0x50] sm:$0xf]
      %v845 = vld [vmem:[%s165 + $0x54] sm:$0xf]
      %v846 = vld [vmem:[%s165 + $0x58] sm:$0xf]
      %v847 = vld [vmem:[%s165 + $0x5c] sm:$0xf]
      %v848 = vld [vmem:[%s165 + $0x60] sm:$0xf]
      %v849 = vld [vmem:[%s165 + $0x64] sm:$0xf]
      %v850 = vld [vmem:[%s165 + $0x68] sm:$0xf]
      %v851 = vld [vmem:[%s165 + $0x6c] sm:$0xf]
      %v852 = vld [vmem:[%s165 + $0x70] sm:$0xf]
      %v853 = vld [vmem:[%s165 + $0x74] sm:$0xf]
      %v854 = vld [vmem:[%s165 + $0x78] sm:$0xf]
      %v855 = vld [vmem:[%s165 + $0x7c] sm:$0xf]
      %v856 = vld [vmem:[%s165 + $0x80] sm:$0xf]
      %v857 = vld [vmem:[%s165 + $0x84] sm:$0xf]
      %s858 = scalar_lea.vmem %s1, 4
      %v859 = vld [vmem:[%s858] sm:$0x3]
      %v892 = vunpack.c.l.b16 %v826
      %v893 = vunpack.c.l.b16 %v827
      %v894 = vunpack.c.l.b16 %v828
      %v895 = vunpack.c.l.b16 %v829
      %v896 = vunpack.c.l.b16 %v830
      %v897 = vunpack.c.l.b16 %v831
      %v898 = vunpack.c.l.b16 %v832
      %v899 = vunpack.c.l.b16 %v833
      %v900 = vunpack.c.l.b16 %v834
      %v901 = vunpack.c.l.b16 %v835
      %v902 = vunpack.c.l.b16 %v836
      %v903 = vunpack.c.l.b16 %v837
      %v904 = vunpack.c.l.b16 %v838
      %v905 = vunpack.c.l.b16 %v839
      %v906 = vunpack.c.l.b16 %v840
      %v907 = vunpack.c.l.b16 %v841
      %v908 = vunpack.c.l.b16 %v842
      %v909 = vunpack.c.l.b16 %v843
      %v910 = vunpack.c.l.b16 %v844
      %v911 = vunpack.c.l.b16 %v845
      %v912 = vunpack.c.l.b16 %v846
      %v913 = vunpack.c.l.b16 %v847
      %v914 = vunpack.c.l.b16 %v848
      %v915 = vunpack.c.l.b16 %v849
      %v916 = vunpack.c.l.b16 %v850
      %v917 = vunpack.c.l.b16 %v851
      %v918 = vunpack.c.l.b16 %v852
      %v919 = vunpack.c.l.b16 %v853
      %v920 = vunpack.c.l.b16 %v854
      %v921 = vunpack.c.l.b16 %v855
      %v922 = vunpack.c.l.b16 %v856
      %v923 = vunpack.c.l.b16 %v857
      %v924 = vpack.c.b16 %v893, %v892
      %v925 = vpack.c.b16 %v895, %v894
      %v926 = vpack.c.b16 %v897, %v896
      %v927 = vpack.c.b16 %v899, %v898
      %v928 = vpack.c.b16 %v901, %v900
      %v929 = vpack.c.b16 %v903, %v902
      %v930 = vpack.c.b16 %v905, %v904
      %v931 = vpack.c.b16 %v907, %v906
      %v932 = vpack.c.b16 %v909, %v908
      %v933 = vpack.c.b16 %v911, %v910
      %v934 = vpack.c.b16 %v913, %v912
      %v935 = vpack.c.b16 %v915, %v914
      %v936 = vpack.c.b16 %v917, %v916
      %v937 = vpack.c.b16 %v919, %v918
      %v938 = vpack.c.b16 %v921, %v920
      %v939 = vpack.c.b16 %v923, %v922
      %v941 = vsel %vm320, %v924, 0
      %v944 = vsel %vm320, %v925, 0
      %v947 = vsel %vm320, %v926, 0
      %v950 = vsel %vm320, %v927, 0
      %v953 = vsel %vm320, %v928, 0
      %v956 = vsel %vm320, %v929, 0
      %v959 = vsel %vm320, %v930, 0
      %v962 = vsel %vm320, %v931, 0
      %v965 = vsel %vm320, %v932, 0
      %v968 = vsel %vm320, %v933, 0
      %v971 = vsel %vm320, %v934, 0
      %v974 = vsel %vm320, %v935, 0
      %v977 = vsel %vm320, %v936, 0
      %v980 = vsel %vm320, %v937, 0
      %v983 = vsel %vm320, %v938, 0
      %v986 = vsel %vm320, %v939, 0
      %v989 = vsel %vm369, %v859, 0
      %991 = vmatprep.subr.bf16.mxu0 0
      %992 = vmatpush1.bf16.msra.mxu0 0
      %993 = vmatprep.subr.bf16.mxu0 0
      %994 = vmatpush1.bf16.msra.mxu0 0
      %995 = vmatprep.subr.bf16.mxu0 0
      %996 = vmatpush1.bf16.msra.mxu0 0
      %997 = vmatprep.subr.bf16.mxu0 0
      %998 = vmatpush1.bf16.msra.mxu0 0
      %999 = vmatprep.subr.bf16.mxu0 0
      %1000 = vmatpush1.bf16.msra.mxu0 0
      %1001 = vmatprep.subr.bf16.mxu0 0
      %1002 = vmatpush1.bf16.msra.mxu0 0
      %1003 = vmatprep.subr.bf16.mxu0 0
      %1004 = vmatpush1.bf16.msra.mxu0 0
      %1005 = vmatprep.subr.bf16.mxu0 0
      %1006 = vmatpush1.bf16.msra.mxu0 %v989
      %1007 = vmatprep.subr.bf16.mxu0 0
      %1008 = vmatpush2.bf16.msra.mxu0 0
      %1009 = vmatprep.subr.bf16.mxu0 0
      %1010 = vmatpush2.bf16.msra.mxu0 0
      %1011 = vmatprep.subr.bf16.mxu0 0
      %1012 = vmatpush2.bf16.msra.mxu0 0
      %1013 = vmatprep.subr.bf16.mxu0 0
      %1014 = vmatpush2.bf16.msra.mxu0 0
      %1015 = vmatprep.subr.bf16.mxu0 0
      %1016 = vmatpush2.bf16.msra.mxu0 0
      %1017 = vmatprep.subr.bf16.mxu0 0
      %1018 = vmatpush2.bf16.msra.mxu0 0
      %1019 = vmatprep.subr.bf16.mxu0 0
      %1020 = vmatpush2.bf16.msra.mxu0 0
      %1021 = vmatprep.subr.bf16.mxu0 0
      %1022 = vmatpush2.bf16.msra.mxu0 0
      %1023 = vmatprep.mubr.bf16.mxu0 0
      %1024 = vmatmul.mubr.bf16.gmra.mxu0 %v941
      %v1025 = vpop.f32.mrf.mxu0
      %v1026 = vadd.f32 0.0, %v1025
      %v1027 = vpop.f32.mrf.mxu0
      %v1028 = vpop.f32.mrf.mxu0
      %v1029 = vadd.f32 0.0, %v1028
      %v1030 = vpop.f32.mrf.mxu0
      %1031 = vmatprep.mubr.bf16.mxu0 0
      %1032 = vmatmul.mubr.bf16.gmra.mxu0 %v944
      %v1033 = vpop.f32.mrf.mxu0
      %v1034 = vadd.f32 0.0, %v1033
      %v1035 = vpop.f32.mrf.mxu0
      %v1036 = vpop.f32.mrf.mxu0
      %v1037 = vadd.f32 0.0, %v1036
      %v1038 = vpop.f32.mrf.mxu0
      %1039 = vmatprep.mubr.bf16.mxu0 0
      %1040 = vmatmul.mubr.bf16.gmra.mxu0 %v947
      %v1041 = vpop.f32.mrf.mxu0
      %v1042 = vadd.f32 0.0, %v1041
      %v1043 = vpop.f32.mrf.mxu0
      %v1044 = vpop.f32.mrf.mxu0
      %v1045 = vadd.f32 0.0, %v1044
      %v1046 = vpop.f32.mrf.mxu0
      %1047 = vmatprep.mubr.bf16.mxu0 0
      %1048 = vmatmul.mubr.bf16.gmra.mxu0 %v950
      %v1049 = vpop.f32.mrf.mxu0
      %v1050 = vadd.f32 0.0, %v1049
      %v1051 = vpop.f32.mrf.mxu0
      %v1052 = vpop.f32.mrf.mxu0
      %v1053 = vadd.f32 0.0, %v1052
      %v1054 = vpop.f32.mrf.mxu0
      %1055 = vmatprep.mubr.bf16.mxu0 0
      %1056 = vmatmul.mubr.bf16.gmra.mxu0 %v953
      %v1057 = vpop.f32.mrf.mxu0
      %v1058 = vadd.f32 0.0, %v1057
      %v1059 = vpop.f32.mrf.mxu0
      %v1060 = vpop.f32.mrf.mxu0
      %v1061 = vadd.f32 0.0, %v1060
      %v1062 = vpop.f32.mrf.mxu0
      %1063 = vmatprep.mubr.bf16.mxu0 0
      %1064 = vmatmul.mubr.bf16.gmra.mxu0 %v956
      %v1065 = vpop.f32.mrf.mxu0
      %v1066 = vadd.f32 0.0, %v1065
      %v1067 = vpop.f32.mrf.mxu0
      %v1068 = vpop.f32.mrf.mxu0
      %v1069 = vadd.f32 0.0, %v1068
      %v1070 = vpop.f32.mrf.mxu0
      %1071 = vmatprep.mubr.bf16.mxu0 0
      %1072 = vmatmul.mubr.bf16.gmra.mxu0 %v959
      %v1073 = vpop.f32.mrf.mxu0
      %v1074 = vadd.f32 0.0, %v1073
      %v1075 = vpop.f32.mrf.mxu0
      %v1076 = vpop.f32.mrf.mxu0
      %v1077 = vadd.f32 0.0, %v1076
      %v1078 = vpop.f32.mrf.mxu0
      %1079 = vmatprep.mubr.bf16.mxu0 0
      %1080 = vmatmul.mubr.bf16.gmra.mxu0 %v962
      %v1081 = vpop.f32.mrf.mxu0
      %v1082 = vadd.f32 0.0, %v1081
      %v1083 = vpop.f32.mrf.mxu0
      %v1084 = vpop.f32.mrf.mxu0
      %v1085 = vadd.f32 0.0, %v1084
      %v1086 = vpop.f32.mrf.mxu0
      %1087 = vmatprep.mubr.bf16.mxu0 0
      %1088 = vmatmul.mubr.bf16.gmra.mxu0 %v965
      %v1089 = vpop.f32.mrf.mxu0
      %v1090 = vadd.f32 0.0, %v1089
      %v1091 = vpop.f32.mrf.mxu0
      %v1092 = vpop.f32.mrf.mxu0
      %v1093 = vadd.f32 0.0, %v1092
      %v1094 = vpop.f32.mrf.mxu0
      %1095 = vmatprep.mubr.bf16.mxu0 0
      %1096 = vmatmul.mubr.bf16.gmra.mxu0 %v968
      %v1097 = vpop.f32.mrf.mxu0
      %v1098 = vadd.f32 0.0, %v1097
      %v1099 = vpop.f32.mrf.mxu0
      %v1100 = vpop.f32.mrf.mxu0
      %v1101 = vadd.f32 0.0, %v1100
      %v1102 = vpop.f32.mrf.mxu0
      %1103 = vmatprep.mubr.bf16.mxu0 0
      %1104 = vmatmul.mubr.bf16.gmra.mxu0 %v971
      %v1105 = vpop.f32.mrf.mxu0
      %v1106 = vadd.f32 0.0, %v1105
      %v1107 = vpop.f32.mrf.mxu0
      %v1108 = vpop.f32.mrf.mxu0
      %v1109 = vadd.f32 0.0, %v1108
      %v1110 = vpop.f32.mrf.mxu0
      %1111 = vmatprep.mubr.bf16.mxu0 0
      %1112 = vmatmul.mubr.bf16.gmra.mxu0 %v974
      %v1113 = vpop.f32.mrf.mxu0
      %v1114 = vadd.f32 0.0, %v1113
      %v1115 = vpop.f32.mrf.mxu0
      %v1116 = vpop.f32.mrf.mxu0
      %v1117 = vadd.f32 0.0, %v1116
      %v1118 = vpop.f32.mrf.mxu0
      %1119 = vmatprep.mubr.bf16.mxu0 0
      %1120 = vmatmul.mubr.bf16.gmra.mxu0 %v977
      %v1121 = vpop.f32.mrf.mxu0
      %v1122 = vadd.f32 0.0, %v1121
      %v1123 = vpop.f32.mrf.mxu0
      %v1124 = vpop.f32.mrf.mxu0
      %v1125 = vadd.f32 0.0, %v1124
      %v1126 = vpop.f32.mrf.mxu0
      %1127 = vmatprep.mubr.bf16.mxu0 0
      %1128 = vmatmul.mubr.bf16.gmra.mxu0 %v980
      %v1129 = vpop.f32.mrf.mxu0
      %v1130 = vadd.f32 0.0, %v1129
      %v1131 = vpop.f32.mrf.mxu0
      %v1132 = vpop.f32.mrf.mxu0
      %v1133 = vadd.f32 0.0, %v1132
      %v1134 = vpop.f32.mrf.mxu0
      %1135 = vmatprep.mubr.bf16.mxu0 0
      %1136 = vmatmul.mubr.bf16.gmra.mxu0 %v983
      %v1137 = vpop.f32.mrf.mxu0
      %v1138 = vadd.f32 0.0, %v1137
      %v1139 = vpop.f32.mrf.mxu0
      %v1140 = vpop.f32.mrf.mxu0
      %v1141 = vadd.f32 0.0, %v1140
      %v1142 = vpop.f32.mrf.mxu0
      %1143 = vmatprep.mubr.bf16.mxu0 0
      %1144 = vmatmul.mubr.bf16.gmra.mxu0 %v986
      %v1145 = vpop.f32.mrf.mxu0
      %v1146 = vadd.f32 0.0, %v1145
      %v1147 = vpop.f32.mrf.mxu0
      %v1148 = vpop.f32.mrf.mxu0
      %v1149 = vadd.f32 0.0, %v1148
      %v1150 = vpop.f32.mrf.mxu0
      %1151 = vdwg.mxu0
      %v1152 = vadd.f32 %v700, %v1026
      %v1153 = vadd.f32 %v703, %v1029
      %v1154 = vadd.f32 %v708, %v1034
      %v1155 = vadd.f32 %v711, %v1037
      %v1156 = vadd.f32 %v716, %v1042
      %v1157 = vadd.f32 %v719, %v1045
      %v1158 = vadd.f32 %v724, %v1050
      %v1159 = vadd.f32 %v727, %v1053
      %v1160 = vadd.f32 %v732, %v1058
      %v1161 = vadd.f32 %v735, %v1061
      %v1162 = vadd.f32 %v740, %v1066
      %v1163 = vadd.f32 %v743, %v1069
      %v1164 = vadd.f32 %v748, %v1074
      %v1165 = vadd.f32 %v751, %v1077
      %v1166 = vadd.f32 %v756, %v1082
      %v1167 = vadd.f32 %v759, %v1085
      %v1168 = vadd.f32 %v764, %v1090
      %v1169 = vadd.f32 %v767, %v1093
      %v1170 = vadd.f32 %v772, %v1098
      %v1171 = vadd.f32 %v775, %v1101
      %v1172 = vadd.f32 %v780, %v1106
      %v1173 = vadd.f32 %v783, %v1109
      %v1174 = vadd.f32 %v788, %v1114
      %v1175 = vadd.f32 %v791, %v1117
      %v1176 = vadd.f32 %v796, %v1122
      %v1177 = vadd.f32 %v799, %v1125
      %v1178 = vadd.f32 %v804, %v1130
      %v1179 = vadd.f32 %v807, %v1133
      %v1180 = vadd.f32 %v812, %v1138
      %v1181 = vadd.f32 %v815, %v1141
      %v1182 = vadd.f32 %v820, %v1146
      %v1183 = vadd.f32 %v823, %v1149
      %v1184 = vld [vmem:[%s205 + $0x8] sm:$0xf]
      %v1185 = vld [vmem:[%s205 + $0xc] sm:$0xf]
      %v1186 = vld [vmem:[%s205 + $0x10] sm:$0xf]
      %v1187 = vld [vmem:[%s205 + $0x14] sm:$0xf]
      %v1188 = vld [vmem:[%s205 + $0x18] sm:$0xf]
      %v1189 = vld [vmem:[%s205 + $0x1c] sm:$0xf]
      %v1190 = vld [vmem:[%s205 + $0x20] sm:$0xf]
      %v1191 = vld [vmem:[%s205 + $0x24] sm:$0xf]
      %v1192 = vld [vmem:[%s205 + $0x28] sm:$0xf]
      %v1193 = vld [vmem:[%s205 + $0x2c] sm:$0xf]
      %v1194 = vld [vmem:[%s205 + $0x30] sm:$0xf]
      %v1195 = vld [vmem:[%s205 + $0x34] sm:$0xf]
      %v1196 = vld [vmem:[%s205 + $0x38] sm:$0xf]
      %v1197 = vld [vmem:[%s205 + $0x3c] sm:$0xf]
      %v1198 = vld [vmem:[%s205 + $0x40] sm:$0xf]
      %v1199 = vld [vmem:[%s205 + $0x44] sm:$0xf]
      %v1200 = vld [vmem:[%s205 + $0x48] sm:$0xf]
      %v1201 = vld [vmem:[%s205 + $0x4c] sm:$0xf]
      %v1202 = vld [vmem:[%s205 + $0x50] sm:$0xf]
      %v1203 = vld [vmem:[%s205 + $0x54] sm:$0xf]
      %v1204 = vld [vmem:[%s205 + $0x58] sm:$0xf]
      %v1205 = vld [vmem:[%s205 + $0x5c] sm:$0xf]
      %v1206 = vld [vmem:[%s205 + $0x60] sm:$0xf]
      %v1207 = vld [vmem:[%s205 + $0x64] sm:$0xf]
      %v1208 = vld [vmem:[%s205 + $0x68] sm:$0xf]
      %v1209 = vld [vmem:[%s205 + $0x6c] sm:$0xf]
      %v1210 = vld [vmem:[%s205 + $0x70] sm:$0xf]
      %v1211 = vld [vmem:[%s205 + $0x74] sm:$0xf]
      %v1212 = vld [vmem:[%s205 + $0x78] sm:$0xf]
      %v1213 = vld [vmem:[%s205 + $0x7c] sm:$0xf]
      %v1214 = vld [vmem:[%s205 + $0x80] sm:$0xf]
      %v1215 = vld [vmem:[%s205 + $0x84] sm:$0xf]
      %s1216 = scalar_lea.vmem %s1, 6
      %v1217 = vld [vmem:[%s1216] sm:$0x3]
      %v1250 = vunpack.c.l.b16 %v1184
      %v1251 = vunpack.c.l.b16 %v1185
      %v1252 = vunpack.c.l.b16 %v1186
      %v1253 = vunpack.c.l.b16 %v1187
      %v1254 = vunpack.c.l.b16 %v1188
      %v1255 = vunpack.c.l.b16 %v1189
      %v1256 = vunpack.c.l.b16 %v1190
      %v1257 = vunpack.c.l.b16 %v1191
      %v1258 = vunpack.c.l.b16 %v1192
      %v1259 = vunpack.c.l.b16 %v1193
      %v1260 = vunpack.c.l.b16 %v1194
      %v1261 = vunpack.c.l.b16 %v1195
      %v1262 = vunpack.c.l.b16 %v1196
      %v1263 = vunpack.c.l.b16 %v1197
      %v1264 = vunpack.c.l.b16 %v1198
      %v1265 = vunpack.c.l.b16 %v1199
      %v1266 = vunpack.c.l.b16 %v1200
      %v1267 = vunpack.c.l.b16 %v1201
      %v1268 = vunpack.c.l.b16 %v1202
      %v1269 = vunpack.c.l.b16 %v1203
      %v1270 = vunpack.c.l.b16 %v1204
      %v1271 = vunpack.c.l.b16 %v1205
      %v1272 = vunpack.c.l.b16 %v1206
      %v1273 = vunpack.c.l.b16 %v1207
      %v1274 = vunpack.c.l.b16 %v1208
      %v1275 = vunpack.c.l.b16 %v1209
      %v1276 = vunpack.c.l.b16 %v1210
      %v1277 = vunpack.c.l.b16 %v1211
      %v1278 = vunpack.c.l.b16 %v1212
      %v1279 = vunpack.c.l.b16 %v1213
      %v1280 = vunpack.c.l.b16 %v1214
      %v1281 = vunpack.c.l.b16 %v1215
      %v1282 = vpack.c.b16 %v1251, %v1250
      %v1283 = vpack.c.b16 %v1253, %v1252
      %v1284 = vpack.c.b16 %v1255, %v1254
      %v1285 = vpack.c.b16 %v1257, %v1256
      %v1286 = vpack.c.b16 %v1259, %v1258
      %v1287 = vpack.c.b16 %v1261, %v1260
      %v1288 = vpack.c.b16 %v1263, %v1262
      %v1289 = vpack.c.b16 %v1265, %v1264
      %v1290 = vpack.c.b16 %v1267, %v1266
      %v1291 = vpack.c.b16 %v1269, %v1268
      %v1292 = vpack.c.b16 %v1271, %v1270
      %v1293 = vpack.c.b16 %v1273, %v1272
      %v1294 = vpack.c.b16 %v1275, %v1274
      %v1295 = vpack.c.b16 %v1277, %v1276
      %v1296 = vpack.c.b16 %v1279, %v1278
      %v1297 = vpack.c.b16 %v1281, %v1280
      %v1299 = vsel %vm320, %v1282, 0
      %v1302 = vsel %vm320, %v1283, 0
      %v1305 = vsel %vm320, %v1284, 0
      %v1308 = vsel %vm320, %v1285, 0
      %v1311 = vsel %vm320, %v1286, 0
      %v1314 = vsel %vm320, %v1287, 0
      %v1317 = vsel %vm320, %v1288, 0
      %v1320 = vsel %vm320, %v1289, 0
      %v1323 = vsel %vm320, %v1290, 0
      %v1326 = vsel %vm320, %v1291, 0
      %v1329 = vsel %vm320, %v1292, 0
      %v1332 = vsel %vm320, %v1293, 0
      %v1335 = vsel %vm320, %v1294, 0
      %v1338 = vsel %vm320, %v1295, 0
      %v1341 = vsel %vm320, %v1296, 0
      %v1344 = vsel %vm320, %v1297, 0
      %v1347 = vsel %vm369, %v1217, 0
      %1349 = vmatprep.subr.bf16.mxu0 0
      %1350 = vmatpush1.bf16.msra.mxu0 0
      %1351 = vmatprep.subr.bf16.mxu0 0
      %1352 = vmatpush1.bf16.msra.mxu0 0
      %1353 = vmatprep.subr.bf16.mxu0 0
      %1354 = vmatpush1.bf16.msra.mxu0 0
      %1355 = vmatprep.subr.bf16.mxu0 0
      %1356 = vmatpush1.bf16.msra.mxu0 0
      %1357 = vmatprep.subr.bf16.mxu0 0
      %1358 = vmatpush1.bf16.msra.mxu0 0
      %1359 = vmatprep.subr.bf16.mxu0 0
      %1360 = vmatpush1.bf16.msra.mxu0 0
      %1361 = vmatprep.subr.bf16.mxu0 0
      %1362 = vmatpush1.bf16.msra.mxu0 0
      %1363 = vmatprep.subr.bf16.mxu0 0
      %1364 = vmatpush1.bf16.msra.mxu0 %v1347
      %1365 = vmatprep.subr.bf16.mxu0 0
      %1366 = vmatpush2.bf16.msra.mxu0 0
      %1367 = vmatprep.subr.bf16.mxu0 0
      %1368 = vmatpush2.bf16.msra.mxu0 0
      %1369 = vmatprep.subr.bf16.mxu0 0
      %1370 = vmatpush2.bf16.msra.mxu0 0
      %1371 = vmatprep.subr.bf16.mxu0 0
      %1372 = vmatpush2.bf16.msra.mxu0 0
      %1373 = vmatprep.subr.bf16.mxu0 0
      %1374 = vmatpush2.bf16.msra.mxu0 0
      %1375 = vmatprep.subr.bf16.mxu0 0
      %1376 = vmatpush2.bf16.msra.mxu0 0
      %1377 = vmatprep.subr.bf16.mxu0 0
      %1378 = vmatpush2.bf16.msra.mxu0 0
      %1379 = vmatprep.subr.bf16.mxu0 0
      %1380 = vmatpush2.bf16.msra.mxu0 0
      %1381 = vmatprep.mubr.bf16.mxu0 0
      %1382 = vmatmul.mubr.bf16.gmra.mxu0 %v1299
      %v1383 = vpop.f32.mrf.mxu0
      %v1384 = vadd.f32 0.0, %v1383
      %v1385 = vpop.f32.mrf.mxu0
      %v1386 = vpop.f32.mrf.mxu0
      %v1387 = vadd.f32 0.0, %v1386
      %v1388 = vpop.f32.mrf.mxu0
      %1389 = vmatprep.mubr.bf16.mxu0 0
      %1390 = vmatmul.mubr.bf16.gmra.mxu0 %v1302
      %v1391 = vpop.f32.mrf.mxu0
      %v1392 = vadd.f32 0.0, %v1391
      %v1393 = vpop.f32.mrf.mxu0
      %v1394 = vpop.f32.mrf.mxu0
      %v1395 = vadd.f32 0.0, %v1394
      %v1396 = vpop.f32.mrf.mxu0
      %1397 = vmatprep.mubr.bf16.mxu0 0
      %1398 = vmatmul.mubr.bf16.gmra.mxu0 %v1305
      %v1399 = vpop.f32.mrf.mxu0
      %v1400 = vadd.f32 0.0, %v1399
      %v1401 = vpop.f32.mrf.mxu0
      %v1402 = vpop.f32.mrf.mxu0
      %v1403 = vadd.f32 0.0, %v1402
      %v1404 = vpop.f32.mrf.mxu0
      %1405 = vmatprep.mubr.bf16.mxu0 0
      %1406 = vmatmul.mubr.bf16.gmra.mxu0 %v1308
      %v1407 = vpop.f32.mrf.mxu0
      %v1408 = vadd.f32 0.0, %v1407
      %v1409 = vpop.f32.mrf.mxu0
      %v1410 = vpop.f32.mrf.mxu0
      %v1411 = vadd.f32 0.0, %v1410
      %v1412 = vpop.f32.mrf.mxu0
      %1413 = vmatprep.mubr.bf16.mxu0 0
      %1414 = vmatmul.mubr.bf16.gmra.mxu0 %v1311
      %v1415 = vpop.f32.mrf.mxu0
      %v1416 = vadd.f32 0.0, %v1415
      %v1417 = vpop.f32.mrf.mxu0
      %v1418 = vpop.f32.mrf.mxu0
      %v1419 = vadd.f32 0.0, %v1418
      %v1420 = vpop.f32.mrf.mxu0
      %1421 = vmatprep.mubr.bf16.mxu0 0
      %1422 = vmatmul.mubr.bf16.gmra.mxu0 %v1314
      %v1423 = vpop.f32.mrf.mxu0
      %v1424 = vadd.f32 0.0, %v1423
      %v1425 = vpop.f32.mrf.mxu0
      %v1426 = vpop.f32.mrf.mxu0
      %v1427 = vadd.f32 0.0, %v1426
      %v1428 = vpop.f32.mrf.mxu0
      %1429 = vmatprep.mubr.bf16.mxu0 0
      %1430 = vmatmul.mubr.bf16.gmra.mxu0 %v1317
      %v1431 = vpop.f32.mrf.mxu0
      %v1432 = vadd.f32 0.0, %v1431
      %v1433 = vpop.f32.mrf.mxu0
      %v1434 = vpop.f32.mrf.mxu0
      %v1435 = vadd.f32 0.0, %v1434
      %v1436 = vpop.f32.mrf.mxu0
      %1437 = vmatprep.mubr.bf16.mxu0 0
      %1438 = vmatmul.mubr.bf16.gmra.mxu0 %v1320
      %v1439 = vpop.f32.mrf.mxu0
      %v1440 = vadd.f32 0.0, %v1439
      %v1441 = vpop.f32.mrf.mxu0
      %v1442 = vpop.f32.mrf.mxu0
      %v1443 = vadd.f32 0.0, %v1442
      %v1444 = vpop.f32.mrf.mxu0
      %1445 = vmatprep.mubr.bf16.mxu0 0
      %1446 = vmatmul.mubr.bf16.gmra.mxu0 %v1323
      %v1447 = vpop.f32.mrf.mxu0
      %v1448 = vadd.f32 0.0, %v1447
      %v1449 = vpop.f32.mrf.mxu0
      %v1450 = vpop.f32.mrf.mxu0
      %v1451 = vadd.f32 0.0, %v1450
      %v1452 = vpop.f32.mrf.mxu0
      %1453 = vmatprep.mubr.bf16.mxu0 0
      %1454 = vmatmul.mubr.bf16.gmra.mxu0 %v1326
      %v1455 = vpop.f32.mrf.mxu0
      %v1456 = vadd.f32 0.0, %v1455
      %v1457 = vpop.f32.mrf.mxu0
      %v1458 = vpop.f32.mrf.mxu0
      %v1459 = vadd.f32 0.0, %v1458
      %v1460 = vpop.f32.mrf.mxu0
      %1461 = vmatprep.mubr.bf16.mxu0 0
      %1462 = vmatmul.mubr.bf16.gmra.mxu0 %v1329
      %v1463 = vpop.f32.mrf.mxu0
      %v1464 = vadd.f32 0.0, %v1463
      %v1465 = vpop.f32.mrf.mxu0
      %v1466 = vpop.f32.mrf.mxu0
      %v1467 = vadd.f32 0.0, %v1466
      %v1468 = vpop.f32.mrf.mxu0
      %1469 = vmatprep.mubr.bf16.mxu0 0
      %1470 = vmatmul.mubr.bf16.gmra.mxu0 %v1332
      %v1471 = vpop.f32.mrf.mxu0
      %v1472 = vadd.f32 0.0, %v1471
      %v1473 = vpop.f32.mrf.mxu0
      %v1474 = vpop.f32.mrf.mxu0
      %v1475 = vadd.f32 0.0, %v1474
      %v1476 = vpop.f32.mrf.mxu0
      %1477 = vmatprep.mubr.bf16.mxu0 0
      %1478 = vmatmul.mubr.bf16.gmra.mxu0 %v1335
      %v1479 = vpop.f32.mrf.mxu0
      %v1480 = vadd.f32 0.0, %v1479
      %v1481 = vpop.f32.mrf.mxu0
      %v1482 = vpop.f32.mrf.mxu0
      %v1483 = vadd.f32 0.0, %v1482
      %v1484 = vpop.f32.mrf.mxu0
      %1485 = vmatprep.mubr.bf16.mxu0 0
      %1486 = vmatmul.mubr.bf16.gmra.mxu0 %v1338
      %v1487 = vpop.f32.mrf.mxu0
      %v1488 = vadd.f32 0.0, %v1487
      %v1489 = vpop.f32.mrf.mxu0
      %v1490 = vpop.f32.mrf.mxu0
      %v1491 = vadd.f32 0.0, %v1490
      %v1492 = vpop.f32.mrf.mxu0
      %1493 = vmatprep.mubr.bf16.mxu0 0
      %1494 = vmatmul.mubr.bf16.gmra.mxu0 %v1341
      %v1495 = vpop.f32.mrf.mxu0
      %v1496 = vadd.f32 0.0, %v1495
      %v1497 = vpop.f32.mrf.mxu0
      %v1498 = vpop.f32.mrf.mxu0
      %v1499 = vadd.f32 0.0, %v1498
      %v1500 = vpop.f32.mrf.mxu0
      %1501 = vmatprep.mubr.bf16.mxu0 0
      %1502 = vmatmul.mubr.bf16.gmra.mxu0 %v1344
      %v1503 = vpop.f32.mrf.mxu0
      %v1504 = vadd.f32 0.0, %v1503
      %v1505 = vpop.f32.mrf.mxu0
      %v1506 = vpop.f32.mrf.mxu0
      %v1507 = vadd.f32 0.0, %v1506
      %v1508 = vpop.f32.mrf.mxu0
      %1509 = vdwg.mxu0
      %v1510 = vadd.f32 %v1152, %v1384
      %v1511 = vadd.f32 %v1153, %v1387
      %v1512 = vadd.f32 %v1154, %v1392
      %v1513 = vadd.f32 %v1155, %v1395
      %v1514 = vadd.f32 %v1156, %v1400
      %v1515 = vadd.f32 %v1157, %v1403
      %v1516 = vadd.f32 %v1158, %v1408
      %v1517 = vadd.f32 %v1159, %v1411
      %v1518 = vadd.f32 %v1160, %v1416
      %v1519 = vadd.f32 %v1161, %v1419
      %v1520 = vadd.f32 %v1162, %v1424
      %v1521 = vadd.f32 %v1163, %v1427
      %v1522 = vadd.f32 %v1164, %v1432
      %v1523 = vadd.f32 %v1165, %v1435
      %v1524 = vadd.f32 %v1166, %v1440
      %v1525 = vadd.f32 %v1167, %v1443
      %v1526 = vadd.f32 %v1168, %v1448
      %v1527 = vadd.f32 %v1169, %v1451
      %v1528 = vadd.f32 %v1170, %v1456
      %v1529 = vadd.f32 %v1171, %v1459
      %v1530 = vadd.f32 %v1172, %v1464
      %v1531 = vadd.f32 %v1173, %v1467
      %v1532 = vadd.f32 %v1174, %v1472
      %v1533 = vadd.f32 %v1175, %v1475
      %v1534 = vadd.f32 %v1176, %v1480
      %v1535 = vadd.f32 %v1177, %v1483
      %v1536 = vadd.f32 %v1178, %v1488
      %v1537 = vadd.f32 %v1179, %v1491
      %v1538 = vadd.f32 %v1180, %v1496
      %v1539 = vadd.f32 %v1181, %v1499
      %v1540 = vadd.f32 %v1182, %v1504
      %v1541 = vadd.f32 %v1183, %v1507
      %v1542 = vld [vmem:[%s2] sm:$0x1]
      %v1544 = vlaneseq
      %v1545 = vshrl.u32 %v1544, 7
      %v1546 = vsub.s32 0, %v1545
      %v1547 = vrot.slane %v1542, %v1546
      %v1549 = vadd.f32 %v1510, %v1547
      %v1550 = vadd.f32 %v1511, %v1547
      %v1551 = vadd.f32 %v1512, %v1547
      %v1552 = vadd.f32 %v1513, %v1547
      %v1553 = vadd.f32 %v1514, %v1547
      %v1554 = vadd.f32 %v1515, %v1547
      %v1555 = vadd.f32 %v1516, %v1547
      %v1556 = vadd.f32 %v1517, %v1547
      %v1557 = vadd.f32 %v1518, %v1547
      %v1558 = vadd.f32 %v1519, %v1547
      %v1559 = vadd.f32 %v1520, %v1547
      %v1560 = vadd.f32 %v1521, %v1547
      %v1561 = vadd.f32 %v1522, %v1547
      %v1562 = vadd.f32 %v1523, %v1547
      %v1563 = vadd.f32 %v1524, %v1547
      %v1564 = vadd.f32 %v1525, %v1547
      %v1565 = vadd.f32 %v1526, %v1547
      %v1566 = vadd.f32 %v1527, %v1547
      %v1567 = vadd.f32 %v1528, %v1547
      %v1568 = vadd.f32 %v1529, %v1547
      %v1569 = vadd.f32 %v1530, %v1547
      %v1570 = vadd.f32 %v1531, %v1547
      %v1571 = vadd.f32 %v1532, %v1547
      %v1572 = vadd.f32 %v1533, %v1547
      %v1573 = vadd.f32 %v1534, %v1547
      %v1574 = vadd.f32 %v1535, %v1547
      %v1575 = vadd.f32 %v1536, %v1547
      %v1576 = vadd.f32 %v1537, %v1547
      %v1577 = vadd.f32 %v1538, %v1547
      %v1578 = vadd.f32 %v1539, %v1547
      %v1579 = vadd.f32 %v1540, %v1547
      %v1580 = vadd.f32 %v1541, %v1547
      %v1581 = vmax.f32 %v1549, 0.0
      %v1582 = vmax.f32 %v1550, 0.0
      %v1583 = vmax.f32 %v1551, 0.0
      %v1584 = vmax.f32 %v1552, 0.0
      %v1585 = vmax.f32 %v1553, 0.0
      %v1586 = vmax.f32 %v1554, 0.0
      %v1587 = vmax.f32 %v1555, 0.0
      %v1588 = vmax.f32 %v1556, 0.0
      %v1589 = vmax.f32 %v1557, 0.0
      %v1590 = vmax.f32 %v1558, 0.0
      %v1591 = vmax.f32 %v1559, 0.0
      %v1592 = vmax.f32 %v1560, 0.0
      %v1593 = vmax.f32 %v1561, 0.0
      %v1594 = vmax.f32 %v1562, 0.0
      %v1595 = vmax.f32 %v1563, 0.0
      %v1596 = vmax.f32 %v1564, 0.0
      %v1597 = vmax.f32 %v1565, 0.0
      %v1598 = vmax.f32 %v1566, 0.0
      %v1599 = vmax.f32 %v1567, 0.0
      %v1600 = vmax.f32 %v1568, 0.0
      %v1601 = vmax.f32 %v1569, 0.0
      %v1602 = vmax.f32 %v1570, 0.0
      %v1603 = vmax.f32 %v1571, 0.0
      %v1604 = vmax.f32 %v1572, 0.0
      %v1605 = vmax.f32 %v1573, 0.0
      %v1606 = vmax.f32 %v1574, 0.0
      %v1607 = vmax.f32 %v1575, 0.0
      %v1608 = vmax.f32 %v1576, 0.0
      %v1609 = vmax.f32 %v1577, 0.0
      %v1610 = vmax.f32 %v1578, 0.0
      %v1611 = vmax.f32 %v1579, 0.0
      %v1612 = vmax.f32 %v1580, 0.0
      %1613 = vst [vmem:[%s170] sm:$0xff] %v1581
      %1614 = vst [vmem:[%s170 + $0x8] sm:$0xff] %v1582
      %1615 = vst [vmem:[%s170 + $0x10] sm:$0xff] %v1583
      %1616 = vst [vmem:[%s170 + $0x18] sm:$0xff] %v1584
      %1617 = vst [vmem:[%s170 + $0x20] sm:$0xff] %v1585
      %1618 = vst [vmem:[%s170 + $0x28] sm:$0xff] %v1586
      %1619 = vst [vmem:[%s170 + $0x30] sm:$0xff] %v1587
      %1620 = vst [vmem:[%s170 + $0x38] sm:$0xff] %v1588
      %1621 = vst [vmem:[%s170 + $0x40] sm:$0xff] %v1589
      %1622 = vst [vmem:[%s170 + $0x48] sm:$0xff] %v1590
      %1623 = vst [vmem:[%s170 + $0x50] sm:$0xff] %v1591
      %1624 = vst [vmem:[%s170 + $0x58] sm:$0xff] %v1592
      %1625 = vst [vmem:[%s170 + $0x60] sm:$0xff] %v1593
      %1626 = vst [vmem:[%s170 + $0x68] sm:$0xff] %v1594
      %1627 = vst [vmem:[%s170 + $0x70] sm:$0xff] %v1595
      %1628 = vst [vmem:[%s170 + $0x78] sm:$0xff] %v1596
      %1629 = vst [vmem:[%s170 + $0x80] sm:$0xff] %v1597
      %1630 = vst [vmem:[%s170 + $0x88] sm:$0xff] %v1598
      %1631 = vst [vmem:[%s170 + $0x90] sm:$0xff] %v1599
      %1632 = vst [vmem:[%s170 + $0x98] sm:$0xff] %v1600
      %1633 = vst [vmem:[%s170 + $0xa0] sm:$0xff] %v1601
      %1634 = vst [vmem:[%s170 + $0xa8] sm:$0xff] %v1602
      %1635 = vst [vmem:[%s170 + $0xb0] sm:$0xff] %v1603
      %1636 = vst [vmem:[%s170 + $0xb8] sm:$0xff] %v1604
      %1637 = vst [vmem:[%s170 + $0xc0] sm:$0xff] %v1605
      %1638 = vst [vmem:[%s170 + $0xc8] sm:$0xff] %v1606
      %1639 = vst [vmem:[%s170 + $0xd0] sm:$0xff] %v1607
      %1640 = vst [vmem:[%s170 + $0xd8] sm:$0xff] %v1608
      %1641 = vst [vmem:[%s170 + $0xe0] sm:$0xff] %v1609
      %1642 = vst [vmem:[%s170 + $0xe8] sm:$0xff] %v1610
      %1643 = vst [vmem:[%s170 + $0xf0] sm:$0xff] %v1611
      %1644 = vst [vmem:[%s170 + $0xf8] sm:$0xff] %v1612
      %p1645 = scmp.lt.s32.totalorder %s14, 1
      %s1646 = scalar_select %p1645, %s14, 1
      %s1647 = smul.addr %s1646, 32
      %s1648 = smul.addr %s1647, 8
      %s1649 = scalar_lea.vmem %s3, %s1648
      // Predicated region
      $region33: #{deconv2d_block_forward.1} parent=31 // pred_check
        %p1650 = pneg %p100
      $region34: #{deconv2d_block_forward.1} parent=31 // pred_check_branch
        %1652 = sbr.rel (%p1650) target = $region36
      $region35: #{deconv2d_block_forward.1} parent=31 // pred_region
        _
      $region36: #{deconv2d_block_forward.1} parent=31 // pred_fallthru
        _
    $region32: #{deconv2d_block_forward.1} parent=5 // pred_fallthru
      _
    %p1653 = scmp.le.s32.totalorder 2, %s9
    // Predicated region
    $region37: #{deconv2d_block_forward.1} parent=5 // pred_check
      %p1654 = pneg %p1653
    $region38: #{deconv2d_block_forward.1} parent=5 // pred_check_branch
      %1656 = sbr.rel (%p1654) target = $region40
    $region39: #{deconv2d_block_forward.1} parent=5 // pred_region
      %s1657 = ssub.s32 %s9, 2
      // Predicated region
      $region41: #{deconv2d_block_forward.1} parent=39 // pred_check
        %p1658 = pneg %p106
      $region42: #{deconv2d_block_forward.1} parent=39 // pred_check_branch
        %1660 = sbr.rel (%p1658) target = $region44
      $region43: #{deconv2d_block_forward.1} parent=39 // pred_region
        %p1661 = scmp.lt.s32.totalorder %s15, 1
        %s1662 = scalar_select %p1661, %s15, 1
        %s1663 = smul.addr %s1662, 32
        %s1664 = smul.addr %s1663, 8
        %s1665 = scalar_lea.vmem %s3, %s1664
      $region44: #{deconv2d_block_forward.1} parent=39 // pred_fallthru
        _
    $region40: #{deconv2d_block_forward.1} parent=5 // pred_fallthru
      _
  $region6: #{deconv2d_block_forward.1} parent=0 // loop_footer
    %s13 = sadd.s32 1, %s9
  $region7: #{deconv2d_block_forward.1} parent=0 // loop_footer_branch
    %8 = sbr.rel target = $region3
  $region8: #{deconv2d_block_forward.1} parent=0 // loop_exit
    _

</llo_original>
